<compile_context>
chip_gen: v7x
topology: tpu7x:2x2x1
jax: 0.10.0
libtpu: 0.0.40
codegen_flags: <defaults>
</compile_context>

<pallas_src>
import functools

import jax
import jax.numpy as jnp
from jax import lax
from jax.experimental import pallas as pl
from jax.experimental.pallas import tpu as pltpu


def _attn_kernel(x_ref, wqkv_ref, wo_ref, bo_ref, o_ref, acc_ref, *,
                 heads, dim_head, n_valid, q_tile):
    # x_ref   : (1, N_pad, D)      bf16 current batch element (full sequence)
    # wqkv_ref: (D, 3*inner)       bf16 fused QKV weight (scale folded into Q cols)
    # wo_ref  : (inner, D_out)     bf16 output projection (pre-transposed, lane padded)
    # bo_ref  : (1, D_out)         f32 output bias
    # o_ref   : (1, q_tile, D_out) output block for this query tile
    # acc_ref : (q_tile, inner)    bf16 scratch holding the per-head outputs
    inner = heads * dim_head
    n_pad = x_ref.shape[1]

    x_full = x_ref[0]                                            # (N_pad, D) bf16

    qi = pl.program_id(1)
    if q_tile == n_pad:
        # Single query tile: one wide fused QKV matmul (3*inner lanes).
        qkv = jnp.dot(x_full, wqkv_ref[...],
                      preferred_element_type=jnp.float32)        # (N_pad, 3*inner)
        q_all = qkv[:, :inner]
        kv = qkv[:, inner:]
    else:
        # Query-row tiling (>= 2 parallel grid steps even at batch 1): Q only
        # for this tile's rows, K/V for the whole (padded) sequence.
        row0 = pl.multiple_of(qi * q_tile, q_tile)
        x_q = x_ref[0, pl.ds(row0, q_tile), :]                   # (q_tile, D)
        q_all = jnp.dot(x_q, wqkv_ref[:, :inner],
                        preferred_element_type=jnp.float32)      # (q_tile, inner)
        kv = jnp.dot(x_full, wqkv_ref[:, inner:],
                     preferred_element_type=jnp.float32)         # (N_pad, 2*inner)

    # bf16 operands for the per-head attention matmuls (f32 accumulation).
    q_bf = q_all.astype(jnp.bfloat16)
    k_bf = kv[:, :inner].astype(jnp.bfloat16)
    v_bf = kv[:, inner:].astype(jnp.bfloat16)

    if n_pad != n_valid:
        # Padded x rows are zero, so padded key columns score exp(0); zero
        # them after the exp so they do not pollute the softmax denominator.
        key_mask = (lax.broadcasted_iota(jnp.int32, (1, n_pad), 1)
                    < n_valid).astype(jnp.float32)

    # TODO(synk): for heads >= 12 consider a single batched dot_general over a
    # leading head axis (pltpu.einshape) to amortize MXU ramp/drain on v6e/v7x,
    # and a flash-style KV-tiled online softmax for long sequences.
    for h in range(heads):                       # small static loop over heads
        lo = h * dim_head
        q = q_bf[:, lo:lo + dim_head]                            # (q_tile, d)
        k = k_bf[:, lo:lo + dim_head]                            # (N_pad, d)
        v = v_bf[:, lo:lo + dim_head]                            # (N_pad, d)

        # q @ k^T without materializing a transpose (contract the last dims).
        dots = lax.dot_general(q, k, (((1,), (1,)), ((), ())),
                               preferred_element_type=jnp.float32)  # (q_tile, N_pad)
        # Row-max subtraction kept for numerical safety (cheap vs. the matmuls).
        dots = dots - jnp.max(dots, axis=-1, keepdims=True)
        e = jnp.exp(dots)
        if n_pad != n_valid:
            e = e * key_mask
        # Fold the softmax denominator into the (q_tile, d) head output instead
        # of scaling the (q_tile, N_pad) score block.
        inv = pl.reciprocal(jnp.sum(e, axis=-1, keepdims=True), approx=True)
        head_out = jnp.dot(e.astype(jnp.bfloat16), v,
                           preferred_element_type=jnp.float32) * inv
        acc_ref[:, lo:lo + dim_head] = head_out.astype(acc_ref.dtype)

    # Single wide output projection + bias; lane-dense store.
    out = jnp.dot(acc_ref[...], wo_ref[...], preferred_element_type=jnp.float32)
    o_ref[0] = (out + bo_ref[...]).astype(o_ref.dtype)


def attention_forward(x, w_qkv, w_out, b_out, *, heads, dim_head):
    """Pallas forward of Attention(dim, heads, dim_head, dropout=0.0).

    Weights follow the PyTorch nn.Linear convention:
      w_qkv: (3*inner, D)   to_qkv.weight (bias=False)
      w_out: (D, inner)     to_out[0].weight
      b_out: (D,)           to_out[0].bias
    """
    B, N, D = x.shape
    inner = heads * dim_head
    assert w_qkv.shape == (3 * inner, D)
    assert w_out.shape == (D, inner)
    scale = float(dim_head) ** -0.5

    # --- weight prep: bf16 MXU operands, scale folded into the Q columns ---
    w_qkv_t = jnp.transpose(w_qkv).astype(jnp.float32)           # (D, 3*inner)
    scale_vec = jnp.concatenate([
        jnp.full((inner,), scale, dtype=jnp.float32),
        jnp.ones((2 * inner,), dtype=jnp.float32),
    ])
    w_qkv_bf = (w_qkv_t * scale_vec[None, :]).astype(jnp.bfloat16)

    # Output projection: only pad the output feature dim when D % 128 != 0.
    if D % 128 == 0:
        d_out = D
        w_out_bf = jnp.transpose(w_out).astype(jnp.bfloat16)     # (inner, D)
        bo = b_out.reshape(1, D).astype(jnp.float32)
    else:
        d_out = pl.cdiv(D, 128) * 128
        w_out_bf = jnp.zeros((inner, d_out), jnp.bfloat16)
        w_out_bf = w_out_bf.at[:, :D].set(jnp.transpose(w_out).astype(jnp.bfloat16))
        bo = jnp.zeros((1, d_out), jnp.float32).at[:, :D].set(b_out.astype(jnp.float32))

    # Pad the sequence to a sublane multiple (8); padded keys masked in-kernel.
    n_pad = pl.cdiv(N, 8) * 8
    x_bf = x.astype(jnp.bfloat16)
    if n_pad != N:
        x_bf = jnp.pad(x_bf, ((0, 0), (0, n_pad - N), (0, 0)))

    # Query-row tiling: guarantee >= 2 parallel grid steps even at batch 1 so
    # both v7x TensorCores are used (K/V recomputed per query tile).
    num_q_tiles = 2 if (B == 1 and n_pad % 16 == 0) else 1
    q_tile = n_pad // num_q_tiles

    kernel = functools.partial(_attn_kernel, heads=heads, dim_head=dim_head,
                               n_valid=N, q_tile=q_tile)

    # VMEM budget: weights (worst case 2 buffers) + double-buffered x / out
    # blocks + scratch + large in-kernel temporaries, with headroom, capped at
    # v7x's 64 MiB physical VMEM.
    weight_bytes = (D * 3 * inner + inner * d_out) * 2 + d_out * 4
    io_bytes = 2 * (n_pad * D * 2) + 2 * (q_tile * d_out * 4)
    tmp_bytes = (n_pad * 3 * inner + q_tile * n_pad * 2 + q_tile * inner * 2) * 4
    scratch_bytes = q_tile * inner * 2
    vmem_limit = int((2 * weight_bytes + io_bytes + tmp_bytes + scratch_bytes) * 1.5)
    vmem_limit = min(max(vmem_limit, 32 * 1024 * 1024), 64 * 1024 * 1024)

    def build(single_buffer_weights):
        wkw = dict(pipeline_mode=pl.Buffered(1)) if single_buffer_weights else {}
        grid_spec = pltpu.PrefetchScalarGridSpec(
            num_scalar_prefetch=0,
            grid=(B, num_q_tiles),
            in_specs=[
                pl.BlockSpec((1, n_pad, D), lambda b, qi: (b, 0, 0)),       # x
                pl.BlockSpec((D, 3 * inner), lambda b, qi: (0, 0), **wkw),  # QKV w (resident)
                pl.BlockSpec((inner, d_out), lambda b, qi: (0, 0), **wkw),  # out w (resident)
                pl.BlockSpec((1, d_out), lambda b, qi: (0, 0), **wkw),      # out b (resident)
            ],
            out_specs=pl.BlockSpec((1, q_tile, d_out), lambda b, qi: (b, qi, 0)),
            scratch_shapes=[pltpu.VMEM((q_tile, inner), jnp.bfloat16)],
        )
        return pl.pallas_call(
            kernel,
            out_shape=jax.ShapeDtypeStruct((B, n_pad, d_out), x.dtype),
            grid_spec=grid_spec,
            compiler_params=pltpu.CompilerParams(
                dimension_semantics=("parallel", "parallel"),
                vmem_limit_bytes=vmem_limit),
        )

    args = (x_bf, w_qkv_bf, w_out_bf, bo)
    try:
        out_padded = build(True)(*args)
    except Exception:
        # pl.Buffered(1) not accepted by this JAX/Mosaic version: fall back to
        # default specs — constant index_maps still mean weights are DMA'd once.
        out_padded = build(False)(*args)

    out = out_padded
    if n_pad != N:
        out = out[:, :N, :]
    if d_out != D:
        out = out[:, :, :D]
    return out


def attention_reference(x, w_qkv, w_out, b_out, *, heads, dim_head):
    """Pure-JAX f32 reference mirroring the PyTorch module (dropout=0 / eval)."""
    B, N, D = x.shape
    qkv = x @ w_qkv.T                                  # (B, N, 3*inner)
    q, k, v = jnp.split(qkv, 3, axis=-1)

    def rearr(t):                                      # b n (h d) -> b h n d
        return t.reshape(B, N, heads, dim_head).transpose(0, 2, 1, 3)

    q, k, v = map(rearr, (q, k, v))
    dots = jnp.einsum('bhnd,bhmd->bhnm', q, k) * (dim_head ** -0.5)
    attn = jax.nn.softmax(dots, axis=-1)
    out = jnp.einsum('bhnm,bhmd->bhnd', attn, v)
    out = out.transpose(0, 2, 1, 3).reshape(B, N, heads * dim_head)
    return out @ w_out.T + b_out


if __name__ == "__main__":
    # Small shapes consistent with the module: batch=2, seq=8, dim=32,
    # heads=4, dim_head=16 -> inner_dim=64 (project_out=True).
    B, N, D = 2, 8, 32
    heads, dim_head = 4, 16
    inner = heads * dim_head

    key = jax.random.PRNGKey(0)
    kx, kqkv, kwo, kbo = jax.random.split(key, 4)
    x = jax.random.normal(kx, (B, N, D), dtype=jnp.float32)
    w_qkv = jax.random.normal(kqkv, (3 * inner, D), dtype=jnp.float32) * 0.05
    w_out = jax.random.normal(kwo, (D, inner), dtype=jnp.float32) * 0.05
    b_out = jax.random.normal(kbo, (D,), dtype=jnp.float32) * 0.05

    out = attention_forward(x, w_qkv, w_out, b_out, heads=heads, dim_head=dim_head)
    out = jax.block_until_ready(out)

    ref = attention_reference(x, w_qkv, w_out, b_out, heads=heads, dim_head=dim_head)
    assert out.shape == (B, N, D)
    # bf16 MXU operands + EUP approx reciprocal softmax denominator: relaxed tol.
    assert jnp.allclose(out, ref, atol=2e-2, rtol=2e-2), \
        f"max abs err {jnp.max(jnp.abs(out - ref))}"

    print("KERNEL_OK")
</pallas_src>

<mosaic_0001>
module attributes {stable_mosaic.version = 11 : i64} {
  func.func @_attn_kernel(%arg0: i32, %arg1: i32, %arg2: memref<1x8x32xbf16, #tpu.memory_space<vmem>>, %arg3: memref<32x192xbf16, #tpu.memory_space<vmem>>, %arg4: memref<64x128xbf16, #tpu.memory_space<vmem>>, %arg5: memref<1x128xf32, #tpu.memory_space<vmem>>, %arg6: memref<1x8x128xf32, #tpu.memory_space<vmem>>, %arg7: memref<8x64xbf16, #tpu.memory_space<vmem>>) attributes {dimension_semantics = [#tpu.dimension_semantics<parallel>, #tpu.dimension_semantics<parallel>], iteration_bounds = array<i64: 2, 1>, scalar_prefetch = 0 : i64, scratch_operands = 1 : i64, tpu.core_type = #tpu.core_type<tc>, window_params = [{transform_indices = @transform_0, window_bounds = array<i64: 1, 8, 32>}, {pipeline_mode = #tpu.pipeline_mode<synchronous>, transform_indices = @transform_1, window_bounds = array<i64: 32, 192>}, {pipeline_mode = #tpu.pipeline_mode<synchronous>, transform_indices = @transform_2, window_bounds = array<i64: 64, 128>}, {pipeline_mode = #tpu.pipeline_mode<synchronous>, transform_indices = @transform_3, window_bounds = array<i64: 1, 128>}, {transform_indices = @transform_4, window_bounds = array<i64: 1, 8, 128>}]} {
    %c0 = arith.constant 0 : index
    %c0_0 = arith.constant 0 : index
    %c0_1 = arith.constant 0 : index
    %0 = vector.load %arg2[%c0, %c0_0, %c0_1] : memref<1x8x32xbf16, #tpu.memory_space<vmem>>, vector<1x8x32xbf16>
    %1 = vector.shape_cast %0 : vector<1x8x32xbf16> to vector<8x32xbf16>
    %c0_2 = arith.constant 0 : index
    %c0_3 = arith.constant 0 : index
    %2 = vector.load %arg3[%c0_2, %c0_3] : memref<32x192xbf16, #tpu.memory_space<vmem>>, vector<32x192xbf16>
    %cst = arith.constant dense<0.000000e+00> : vector<8x192xf32>
    %3 = tpu.matmul %1, %2, %cst {dimension_numbers = #tpu.dot_dimension_numbers<[1], [0], [0], [1], [0, 0, 1, 1], [], []>} : vector<8x32xbf16>, vector<32x192xbf16>, vector<8x192xf32> -> vector<8x192xf32>
    %4 = vector.extract_strided_slice %3 {offsets = [0, 0], sizes = [8, 64], strides = [1, 1]} : vector<8x192xf32> to vector<8x64xf32>
    %5 = vector.extract_strided_slice %3 {offsets = [0, 64], sizes = [8, 128], strides = [1, 1]} : vector<8x192xf32> to vector<8x128xf32>
    %6 = arith.truncf %4 : vector<8x64xf32> to vector<8x64xbf16>
    %7 = vector.extract_strided_slice %5 {offsets = [0, 0], sizes = [8, 64], strides = [1, 1]} : vector<8x128xf32> to vector<8x64xf32>
    %8 = arith.truncf %7 : vector<8x64xf32> to vector<8x64xbf16>
    %9 = vector.extract_strided_slice %5 {offsets = [0, 64], sizes = [8, 64], strides = [1, 1]} : vector<8x128xf32> to vector<8x64xf32>
    %10 = arith.truncf %9 : vector<8x64xf32> to vector<8x64xbf16>
    %11 = vector.extract_strided_slice %6 {offsets = [0, 0], sizes = [8, 16], strides = [1, 1]} : vector<8x64xbf16> to vector<8x16xbf16>
    %12 = vector.extract_strided_slice %8 {offsets = [0, 0], sizes = [8, 16], strides = [1, 1]} : vector<8x64xbf16> to vector<8x16xbf16>
    %13 = vector.extract_strided_slice %10 {offsets = [0, 0], sizes = [8, 16], strides = [1, 1]} : vector<8x64xbf16> to vector<8x16xbf16>
    %cst_4 = arith.constant dense<0.000000e+00> : vector<8x8xf32>
    %14 = tpu.matmul %11, %12, %cst_4 {dimension_numbers = #tpu.dot_dimension_numbers<[1], [1], [0], [0], [0, 0, 1, 0], [], []>} : vector<8x16xbf16>, vector<8x16xbf16>, vector<8x8xf32> -> vector<8x8xf32>
    %cst_5 = arith.constant dense<0xFF800000> : vector<8xf32>
    %15 = vector.multi_reduction <maximumf>, %14, %cst_5 [1] : vector<8x8xf32> to vector<8xf32>
    %16 = vector.shape_cast %15 : vector<8xf32> to vector<8x1xf32>
    %17 = vector.broadcast %16 : vector<8x1xf32> to vector<8x8xf32>
    %18 = arith.subf %14, %17 : vector<8x8xf32>
    %19 = math.exp %18 : vector<8x8xf32>
    %cst_6 = arith.constant dense<0.000000e+00> : vector<8xf32>
    %20 = vector.multi_reduction <add>, %19, %cst_6 [1] : vector<8x8xf32> to vector<8xf32>
    %21 = vector.shape_cast %20 : vector<8xf32> to vector<8x1xf32>
    %22 = tpu.reciprocal %21 {approx = true} : vector<8x1xf32> -> vector<8x1xf32>
    %23 = arith.truncf %19 : vector<8x8xf32> to vector<8x8xbf16>
    %cst_7 = arith.constant dense<0.000000e+00> : vector<8x16xf32>
    %24 = tpu.matmul %23, %13, %cst_7 {dimension_numbers = #tpu.dot_dimension_numbers<[1], [0], [0], [1], [0, 0, 1, 1], [], []>} : vector<8x8xbf16>, vector<8x16xbf16>, vector<8x16xf32> -> vector<8x16xf32>
    %25 = vector.broadcast %22 : vector<8x1xf32> to vector<8x16xf32>
    %26 = arith.mulf %24, %25 : vector<8x16xf32>
    %27 = arith.truncf %26 : vector<8x16xf32> to vector<8x16xbf16>
    %c0_8 = arith.constant 0 : index
    %c0_9 = arith.constant 0 : index
    %28 = vector.load %arg7[%c0_8, %c0_9] : memref<8x64xbf16, #tpu.memory_space<vmem>>, vector<8x16xbf16>
    tpu.vector_store %arg7[%c0_8, %c0_9], %27 {strides = array<i32>} : memref<8x64xbf16, #tpu.memory_space<vmem>>, vector<8x16xbf16>,
    %29 = vector.extract_strided_slice %6 {offsets = [0, 16], sizes = [8, 16], strides = [1, 1]} : vector<8x64xbf16> to vector<8x16xbf16>
    %30 = vector.extract_strided_slice %8 {offsets = [0, 16], sizes = [8, 16], strides = [1, 1]} : vector<8x64xbf16> to vector<8x16xbf16>
    %31 = vector.extract_strided_slice %10 {offsets = [0, 16], sizes = [8, 16], strides = [1, 1]} : vector<8x64xbf16> to vector<8x16xbf16>
    %cst_10 = arith.constant dense<0.000000e+00> : vector<8x8xf32>
    %32 = tpu.matmul %29, %30, %cst_10 {dimension_numbers = #tpu.dot_dimension_numbers<[1], [1], [0], [0], [0, 0, 1, 0], [], []>} : vector<8x16xbf16>, vector<8x16xbf16>, vector<8x8xf32> -> vector<8x8xf32>
    %cst_11 = arith.constant dense<0xFF800000> : vector<8xf32>
    %33 = vector.multi_reduction <maximumf>, %32, %cst_11 [1] : vector<8x8xf32> to vector<8xf32>
    %34 = vector.shape_cast %33 : vector<8xf32> to vector<8x1xf32>
    %35 = vector.broadcast %34 : vector<8x1xf32> to vector<8x8xf32>
    %36 = arith.subf %32, %35 : vector<8x8xf32>
    %37 = math.exp %36 : vector<8x8xf32>
    %cst_12 = arith.constant dense<0.000000e+00> : vector<8xf32>
    %38 = vector.multi_reduction <add>, %37, %cst_12 [1] : vector<8x8xf32> to vector<8xf32>
    %39 = vector.shape_cast %38 : vector<8xf32> to vector<8x1xf32>
    %40 = tpu.reciprocal %39 {approx = true} : vector<8x1xf32> -> vector<8x1xf32>
    %41 = arith.truncf %37 : vector<8x8xf32> to vector<8x8xbf16>
    %cst_13 = arith.constant dense<0.000000e+00> : vector<8x16xf32>
    %42 = tpu.matmul %41, %31, %cst_13 {dimension_numbers = #tpu.dot_dimension_numbers<[1], [0], [0], [1], [0, 0, 1, 1], [], []>} : vector<8x8xbf16>, vector<8x16xbf16>, vector<8x16xf32> -> vector<8x16xf32>
    %43 = vector.broadcast %40 : vector<8x1xf32> to vector<8x16xf32>
    %44 = arith.mulf %42, %43 : vector<8x16xf32>
    %45 = arith.truncf %44 : vector<8x16xf32> to vector<8x16xbf16>
    %c0_14 = arith.constant 0 : index
    %c16 = arith.constant 16 : index
    %46 = vector.load %arg7[%c0_14, %c16] : memref<8x64xbf16, #tpu.memory_space<vmem>>, vector<8x16xbf16>
    tpu.vector_store %arg7[%c0_14, %c16], %45 {strides = array<i32>} : memref<8x64xbf16, #tpu.memory_space<vmem>>, vector<8x16xbf16>,
    %47 = vector.extract_strided_slice %6 {offsets = [0, 32], sizes = [8, 16], strides = [1, 1]} : vector<8x64xbf16> to vector<8x16xbf16>
    %48 = vector.extract_strided_slice %8 {offsets = [0, 32], sizes = [8, 16], strides = [1, 1]} : vector<8x64xbf16> to vector<8x16xbf16>
    %49 = vector.extract_strided_slice %10 {offsets = [0, 32], sizes = [8, 16], strides = [1, 1]} : vector<8x64xbf16> to vector<8x16xbf16>
    %cst_15 = arith.constant dense<0.000000e+00> : vector<8x8xf32>
    %50 = tpu.matmul %47, %48, %cst_15 {dimension_numbers = #tpu.dot_dimension_numbers<[1], [1], [0], [0], [0, 0, 1, 0], [], []>} : vector<8x16xbf16>, vector<8x16xbf16>, vector<8x8xf32> -> vector<8x8xf32>
    %cst_16 = arith.constant dense<0xFF800000> : vector<8xf32>
    %51 = vector.multi_reduction <maximumf>, %50, %cst_16 [1] : vector<8x8xf32> to vector<8xf32>
    %52 = vector.shape_cast %51 : vector<8xf32> to vector<8x1xf32>
    %53 = vector.broadcast %52 : vector<8x1xf32> to vector<8x8xf32>
    %54 = arith.subf %50, %53 : vector<8x8xf32>
    %55 = math.exp %54 : vector<8x8xf32>
    %cst_17 = arith.constant dense<0.000000e+00> : vector<8xf32>
    %56 = vector.multi_reduction <add>, %55, %cst_17 [1] : vector<8x8xf32> to vector<8xf32>
    %57 = vector.shape_cast %56 : vector<8xf32> to vector<8x1xf32>
    %58 = tpu.reciprocal %57 {approx = true} : vector<8x1xf32> -> vector<8x1xf32>
    %59 = arith.truncf %55 : vector<8x8xf32> to vector<8x8xbf16>
    %cst_18 = arith.constant dense<0.000000e+00> : vector<8x16xf32>
    %60 = tpu.matmul %59, %49, %cst_18 {dimension_numbers = #tpu.dot_dimension_numbers<[1], [0], [0], [1], [0, 0, 1, 1], [], []>} : vector<8x8xbf16>, vector<8x16xbf16>, vector<8x16xf32> -> vector<8x16xf32>
    %61 = vector.broadcast %58 : vector<8x1xf32> to vector<8x16xf32>
    %62 = arith.mulf %60, %61 : vector<8x16xf32>
    %63 = arith.truncf %62 : vector<8x16xf32> to vector<8x16xbf16>
    %c0_19 = arith.constant 0 : index
    %c32 = arith.constant 32 : index
    %64 = vector.load %arg7[%c0_19, %c32] : memref<8x64xbf16, #tpu.memory_space<vmem>>, vector<8x16xbf16>
    tpu.vector_store %arg7[%c0_19, %c32], %63 {strides = array<i32>} : memref<8x64xbf16, #tpu.memory_space<vmem>>, vector<8x16xbf16>,
    %65 = vector.extract_strided_slice %6 {offsets = [0, 48], sizes = [8, 16], strides = [1, 1]} : vector<8x64xbf16> to vector<8x16xbf16>
    %66 = vector.extract_strided_slice %8 {offsets = [0, 48], sizes = [8, 16], strides = [1, 1]} : vector<8x64xbf16> to vector<8x16xbf16>
    %67 = vector.extract_strided_slice %10 {offsets = [0, 48], sizes = [8, 16], strides = [1, 1]} : vector<8x64xbf16> to vector<8x16xbf16>
    %cst_20 = arith.constant dense<0.000000e+00> : vector<8x8xf32>
    %68 = tpu.matmul %65, %66, %cst_20 {dimension_numbers = #tpu.dot_dimension_numbers<[1], [1], [0], [0], [0, 0, 1, 0], [], []>} : vector<8x16xbf16>, vector<8x16xbf16>, vector<8x8xf32> -> vector<8x8xf32>
    %cst_21 = arith.constant dense<0xFF800000> : vector<8xf32>
    %69 = vector.multi_reduction <maximumf>, %68, %cst_21 [1] : vector<8x8xf32> to vector<8xf32>
    %70 = vector.shape_cast %69 : vector<8xf32> to vector<8x1xf32>
    %71 = vector.broadcast %70 : vector<8x1xf32> to vector<8x8xf32>
    %72 = arith.subf %68, %71 : vector<8x8xf32>
    %73 = math.exp %72 : vector<8x8xf32>
    %cst_22 = arith.constant dense<0.000000e+00> : vector<8xf32>
    %74 = vector.multi_reduction <add>, %73, %cst_22 [1] : vector<8x8xf32> to vector<8xf32>
    %75 = vector.shape_cast %74 : vector<8xf32> to vector<8x1xf32>
    %76 = tpu.reciprocal %75 {approx = true} : vector<8x1xf32> -> vector<8x1xf32>
    %77 = arith.truncf %73 : vector<8x8xf32> to vector<8x8xbf16>
    %cst_23 = arith.constant dense<0.000000e+00> : vector<8x16xf32>
    %78 = tpu.matmul %77, %67, %cst_23 {dimension_numbers = #tpu.dot_dimension_numbers<[1], [0], [0], [1], [0, 0, 1, 1], [], []>} : vector<8x8xbf16>, vector<8x16xbf16>, vector<8x16xf32> -> vector<8x16xf32>
    %79 = vector.broadcast %76 : vector<8x1xf32> to vector<8x16xf32>
    %80 = arith.mulf %78, %79 : vector<8x16xf32>
    %81 = arith.truncf %80 : vector<8x16xf32> to vector<8x16xbf16>
    %c0_24 = arith.constant 0 : index
    %c48 = arith.constant 48 : index
    %82 = vector.load %arg7[%c0_24, %c48] : memref<8x64xbf16, #tpu.memory_space<vmem>>, vector<8x16xbf16>
    tpu.vector_store %arg7[%c0_24, %c48], %81 {strides = array<i32>} : memref<8x64xbf16, #tpu.memory_space<vmem>>, vector<8x16xbf16>,
    %c0_25 = arith.constant 0 : index
    %c0_26 = arith.constant 0 : index
    %83 = vector.load %arg7[%c0_25, %c0_26] : memref<8x64xbf16, #tpu.memory_space<vmem>>, vector<8x64xbf16>
    %c0_27 = arith.constant 0 : index
    %c0_28 = arith.constant 0 : index
    %84 = vector.load %arg4[%c0_27, %c0_28] : memref<64x128xbf16, #tpu.memory_space<vmem>>, vector<64x128xbf16>
    %cst_29 = arith.constant dense<0.000000e+00> : vector<8x128xf32>
    %85 = tpu.matmul %83, %84, %cst_29 {dimension_numbers = #tpu.dot_dimension_numbers<[1], [0], [0], [1], [0, 0, 1, 1], [], []>} : vector<8x64xbf16>, vector<64x128xbf16>, vector<8x128xf32> -> vector<8x128xf32>
    %c0_30 = arith.constant 0 : index
    %c0_31 = arith.constant 0 : index
    %86 = vector.load %arg5[%c0_30, %c0_31] : memref<1x128xf32, #tpu.memory_space<vmem>>, vector<1x128xf32>
    %87 = vector.broadcast %86 : vector<1x128xf32> to vector<8x128xf32>
    %88 = arith.addf %85, %87 : vector<8x128xf32>
    %c0_32 = arith.constant 0 : index
    %c0_33 = arith.constant 0 : index
    %c0_34 = arith.constant 0 : index
    %89 = vector.load %arg6[%c0_32, %c0_33, %c0_34] : memref<1x8x128xf32, #tpu.memory_space<vmem>>, vector<1x8x128xf32>
    %90 = vector.shape_cast %89 : vector<1x8x128xf32> to vector<8x128xf32>
    %91 = vector.shape_cast %88 : vector<8x128xf32> to vector<1x8x128xf32>
    tpu.vector_store %arg6[%c0_32, %c0_33, %c0_34], %91 {strides = array<i32>} : memref<1x8x128xf32, #tpu.memory_space<vmem>>, vector<1x8x128xf32>,
    return
  }
  func.func @transform_0(%arg0: i32, %arg1: i32) -> (i32, i32, i32) {
    %c0_i32 = arith.constant 0 : i32
    %c0_i32_0 = arith.constant 0 : i32
    %c0_i32_1 = arith.constant 0 : i32
    return %arg0, %c0_i32, %c0_i32_0 : i32, i32, i32
  }
  func.func @transform_1(%arg0: i32, %arg1: i32) -> (i32, i32) {
    %c0_i32 = arith.constant 0 : i32
    %c0_i32_0 = arith.constant 0 : i32
    %c0_i32_1 = arith.constant 0 : i32
    return %c0_i32, %c0_i32_0 : i32, i32
  }
  func.func @transform_2(%arg0: i32, %arg1: i32) -> (i32, i32) {
    %c0_i32 = arith.constant 0 : i32
    %c0_i32_0 = arith.constant 0 : i32
    %c0_i32_1 = arith.constant 0 : i32
    return %c0_i32, %c0_i32_0 : i32, i32
  }
  func.func @transform_3(%arg0: i32, %arg1: i32) -> (i32, i32) {
    %c0_i32 = arith.constant 0 : i32
    %c0_i32_0 = arith.constant 0 : i32
    %c0_i32_1 = arith.constant 0 : i32
    return %c0_i32, %c0_i32_0 : i32, i32
  }
  func.func @transform_4(%arg0: i32, %arg1: i32) -> (i32, i32, i32) {
    %c0_i32 = arith.constant 0 : i32
    %c0_i32_0 = arith.constant 0 : i32
    return %arg0, %arg1, %c0_i32 : i32, i32, i32
  }
}

module attributes {stable_mosaic.version = 11 : i64} {
  func.func @_attn_kernel(%arg0: i32, %arg1: i32, %arg2: memref<1x8x32xbf16, #tpu.memory_space<vmem>>, %arg3: memref<32x192xbf16, #tpu.memory_space<vmem>>, %arg4: memref<64x128xbf16, #tpu.memory_space<vmem>>, %arg5: memref<1x128xf32, #tpu.memory_space<vmem>>, %arg6: memref<1x8x128xf32, #tpu.memory_space<vmem>>, %arg7: memref<8x64xbf16, #tpu.memory_space<vmem>>) attributes {dimension_semantics = [#tpu.dimension_semantics<parallel>, #tpu.dimension_semantics<parallel>], iteration_bounds = array<i64: 2, 1>, scalar_prefetch = 0 : i64, scratch_operands = 1 : i64, tpu.core_type = #tpu.core_type<tc>, window_params = [{transform_indices = @transform_0, window_bounds = array<i64: 1, 8, 32>}, {pipeline_mode = #tpu.pipeline_mode<synchronous>, transform_indices = @transform_1, window_bounds = array<i64: 32, 192>}, {pipeline_mode = #tpu.pipeline_mode<synchronous>, transform_indices = @transform_2, window_bounds = array<i64: 64, 128>}, {pipeline_mode = #tpu.pipeline_mode<synchronous>, transform_indices = @transform_3, window_bounds = array<i64: 1, 128>}, {transform_indices = @transform_4, window_bounds = array<i64: 1, 8, 128>}]} {
    %c0 = arith.constant 0 : index
    %c0_0 = arith.constant 0 : index
    %c0_1 = arith.constant 0 : index
    %0 = vector.load %arg2[%c0, %c0_0, %c0_1] : memref<1x8x32xbf16, #tpu.memory_space<vmem>>, vector<1x8x32xbf16>
    %1 = vector.shape_cast %0 : vector<1x8x32xbf16> to vector<8x32xbf16>
    %c0_2 = arith.constant 0 : index
    %c0_3 = arith.constant 0 : index
    %2 = vector.load %arg3[%c0_2, %c0_3] : memref<32x192xbf16, #tpu.memory_space<vmem>>, vector<32x192xbf16>
    %cst = arith.constant dense<0.000000e+00> : vector<8x192xf32>
    %3 = tpu.matmul %1, %2, %cst {dimension_numbers = #tpu.dot_dimension_numbers<[1], [0], [0], [1], [0, 0, 1, 1], [], []>} : vector<8x32xbf16>, vector<32x192xbf16>, vector<8x192xf32> -> vector<8x192xf32>
    %4 = vector.extract_strided_slice %3 {offsets = [0, 0], sizes = [8, 64], strides = [1, 1]} : vector<8x192xf32> to vector<8x64xf32>
    %5 = vector.extract_strided_slice %3 {offsets = [0, 64], sizes = [8, 128], strides = [1, 1]} : vector<8x192xf32> to vector<8x128xf32>
    %6 = arith.truncf %4 : vector<8x64xf32> to vector<8x64xbf16>
    %7 = vector.extract_strided_slice %5 {offsets = [0, 0], sizes = [8, 64], strides = [1, 1]} : vector<8x128xf32> to vector<8x64xf32>
    %8 = arith.truncf %7 : vector<8x64xf32> to vector<8x64xbf16>
    %9 = vector.extract_strided_slice %5 {offsets = [0, 64], sizes = [8, 64], strides = [1, 1]} : vector<8x128xf32> to vector<8x64xf32>
    %10 = arith.truncf %9 : vector<8x64xf32> to vector<8x64xbf16>
    %11 = vector.extract_strided_slice %6 {offsets = [0, 0], sizes = [8, 16], strides = [1, 1]} : vector<8x64xbf16> to vector<8x16xbf16>
    %12 = vector.extract_strided_slice %8 {offsets = [0, 0], sizes = [8, 16], strides = [1, 1]} : vector<8x64xbf16> to vector<8x16xbf16>
    %13 = vector.extract_strided_slice %10 {offsets = [0, 0], sizes = [8, 16], strides = [1, 1]} : vector<8x64xbf16> to vector<8x16xbf16>
    %cst_4 = arith.constant dense<0.000000e+00> : vector<8x8xf32>
    %14 = tpu.matmul %11, %12, %cst_4 {dimension_numbers = #tpu.dot_dimension_numbers<[1], [1], [0], [0], [0, 0, 1, 0], [], []>} : vector<8x16xbf16>, vector<8x16xbf16>, vector<8x8xf32> -> vector<8x8xf32>
    %cst_5 = arith.constant dense<0xFF800000> : vector<8xf32>
    %15 = vector.multi_reduction <maximumf>, %14, %cst_5 [1] : vector<8x8xf32> to vector<8xf32>
    %16 = vector.shape_cast %15 : vector<8xf32> to vector<8x1xf32>
    %17 = vector.broadcast %16 : vector<8x1xf32> to vector<8x8xf32>
    %18 = arith.subf %14, %17 : vector<8x8xf32>
    %19 = math.exp %18 : vector<8x8xf32>
    %cst_6 = arith.constant dense<0.000000e+00> : vector<8xf32>
    %20 = vector.multi_reduction <add>, %19, %cst_6 [1] : vector<8x8xf32> to vector<8xf32>
    %21 = vector.shape_cast %20 : vector<8xf32> to vector<8x1xf32>
    %22 = tpu.reciprocal %21 {approx = true} : vector<8x1xf32> -> vector<8x1xf32>
    %23 = arith.truncf %19 : vector<8x8xf32> to vector<8x8xbf16>
    %cst_7 = arith.constant dense<0.000000e+00> : vector<8x16xf32>
    %24 = tpu.matmul %23, %13, %cst_7 {dimension_numbers = #tpu.dot_dimension_numbers<[1], [0], [0], [1], [0, 0, 1, 1], [], []>} : vector<8x8xbf16>, vector<8x16xbf16>, vector<8x16xf32> -> vector<8x16xf32>
    %25 = vector.broadcast %22 : vector<8x1xf32> to vector<8x16xf32>
    %26 = arith.mulf %24, %25 : vector<8x16xf32>
    %27 = arith.truncf %26 : vector<8x16xf32> to vector<8x16xbf16>
    %c0_8 = arith.constant 0 : index
    %c0_9 = arith.constant 0 : index
    %28 = vector.load %arg7[%c0_8, %c0_9] : memref<8x64xbf16, #tpu.memory_space<vmem>>, vector<8x16xbf16>
    tpu.vector_store %arg7[%c0_8, %c0_9], %27 {strides = array<i32>} : memref<8x64xbf16, #tpu.memory_space<vmem>>, vector<8x16xbf16>,
    %29 = vector.extract_strided_slice %6 {offsets = [0, 16], sizes = [8, 16], strides = [1, 1]} : vector<8x64xbf16> to vector<8x16xbf16>
    %30 = vector.extract_strided_slice %8 {offsets = [0, 16], sizes = [8, 16], strides = [1, 1]} : vector<8x64xbf16> to vector<8x16xbf16>
    %31 = vector.extract_strided_slice %10 {offsets = [0, 16], sizes = [8, 16], strides = [1, 1]} : vector<8x64xbf16> to vector<8x16xbf16>
    %cst_10 = arith.constant dense<0.000000e+00> : vector<8x8xf32>
    %32 = tpu.matmul %29, %30, %cst_10 {dimension_numbers = #tpu.dot_dimension_numbers<[1], [1], [0], [0], [0, 0, 1, 0], [], []>} : vector<8x16xbf16>, vector<8x16xbf16>, vector<8x8xf32> -> vector<8x8xf32>
    %cst_11 = arith.constant dense<0xFF800000> : vector<8xf32>
    %33 = vector.multi_reduction <maximumf>, %32, %cst_11 [1] : vector<8x8xf32> to vector<8xf32>
    %34 = vector.shape_cast %33 : vector<8xf32> to vector<8x1xf32>
    %35 = vector.broadcast %34 : vector<8x1xf32> to vector<8x8xf32>
    %36 = arith.subf %32, %35 : vector<8x8xf32>
    %37 = math.exp %36 : vector<8x8xf32>
    %cst_12 = arith.constant dense<0.000000e+00> : vector<8xf32>
    %38 = vector.multi_reduction <add>, %37, %cst_12 [1] : vector<8x8xf32> to vector<8xf32>
    %39 = vector.shape_cast %38 : vector<8xf32> to vector<8x1xf32>
    %40 = tpu.reciprocal %39 {approx = true} : vector<8x1xf32> -> vector<8x1xf32>
    %41 = arith.truncf %37 : vector<8x8xf32> to vector<8x8xbf16>
    %cst_13 = arith.constant dense<0.000000e+00> : vector<8x16xf32>
    %42 = tpu.matmul %41, %31, %cst_13 {dimension_numbers = #tpu.dot_dimension_numbers<[1], [0], [0], [1], [0, 0, 1, 1], [], []>} : vector<8x8xbf16>, vector<8x16xbf16>, vector<8x16xf32> -> vector<8x16xf32>
    %43 = vector.broadcast %40 : vector<8x1xf32> to vector<8x16xf32>
    %44 = arith.mulf %42, %43 : vector<8x16xf32>
    %45 = arith.truncf %44 : vector<8x16xf32> to vector<8x16xbf16>
    %c0_14 = arith.constant 0 : index
    %c16 = arith.constant 16 : index
    %46 = vector.load %arg7[%c0_14, %c16] : memref<8x64xbf16, #tpu.memory_space<vmem>>, vector<8x16xbf16>
    tpu.vector_store %arg7[%c0_14, %c16], %45 {strides = array<i32>} : memref<8x64xbf16, #tpu.memory_space<vmem>>, vector<8x16xbf16>,
    %47 = vector.extract_strided_slice %6 {offsets = [0, 32], sizes = [8, 16], strides = [1, 1]} : vector<8x64xbf16> to vector<8x16xbf16>
    %48 = vector.extract_strided_slice %8 {offsets = [0, 32], sizes = [8, 16], strides = [1, 1]} : vector<8x64xbf16> to vector<8x16xbf16>
    %49 = vector.extract_strided_slice %10 {offsets = [0, 32], sizes = [8, 16], strides = [1, 1]} : vector<8x64xbf16> to vector<8x16xbf16>
    %cst_15 = arith.constant dense<0.000000e+00> : vector<8x8xf32>
    %50 = tpu.matmul %47, %48, %cst_15 {dimension_numbers = #tpu.dot_dimension_numbers<[1], [1], [0], [0], [0, 0, 1, 0], [], []>} : vector<8x16xbf16>, vector<8x16xbf16>, vector<8x8xf32> -> vector<8x8xf32>
    %cst_16 = arith.constant dense<0xFF800000> : vector<8xf32>
    %51 = vector.multi_reduction <maximumf>, %50, %cst_16 [1] : vector<8x8xf32> to vector<8xf32>
    %52 = vector.shape_cast %51 : vector<8xf32> to vector<8x1xf32>
    %53 = vector.broadcast %52 : vector<8x1xf32> to vector<8x8xf32>
    %54 = arith.subf %50, %53 : vector<8x8xf32>
    %55 = math.exp %54 : vector<8x8xf32>
    %cst_17 = arith.constant dense<0.000000e+00> : vector<8xf32>
    %56 = vector.multi_reduction <add>, %55, %cst_17 [1] : vector<8x8xf32> to vector<8xf32>
    %57 = vector.shape_cast %56 : vector<8xf32> to vector<8x1xf32>
    %58 = tpu.reciprocal %57 {approx = true} : vector<8x1xf32> -> vector<8x1xf32>
    %59 = arith.truncf %55 : vector<8x8xf32> to vector<8x8xbf16>
    %cst_18 = arith.constant dense<0.000000e+00> : vector<8x16xf32>
    %60 = tpu.matmul %59, %49, %cst_18 {dimension_numbers = #tpu.dot_dimension_numbers<[1], [0], [0], [1], [0, 0, 1, 1], [], []>} : vector<8x8xbf16>, vector<8x16xbf16>, vector<8x16xf32> -> vector<8x16xf32>
    %61 = vector.broadcast %58 : vector<8x1xf32> to vector<8x16xf32>
    %62 = arith.mulf %60, %61 : vector<8x16xf32>
    %63 = arith.truncf %62 : vector<8x16xf32> to vector<8x16xbf16>
    %c0_19 = arith.constant 0 : index
    %c32 = arith.constant 32 : index
    %64 = vector.load %arg7[%c0_19, %c32] : memref<8x64xbf16, #tpu.memory_space<vmem>>, vector<8x16xbf16>
    tpu.vector_store %arg7[%c0_19, %c32], %63 {strides = array<i32>} : memref<8x64xbf16, #tpu.memory_space<vmem>>, vector<8x16xbf16>,
    %65 = vector.extract_strided_slice %6 {offsets = [0, 48], sizes = [8, 16], strides = [1, 1]} : vector<8x64xbf16> to vector<8x16xbf16>
    %66 = vector.extract_strided_slice %8 {offsets = [0, 48], sizes = [8, 16], strides = [1, 1]} : vector<8x64xbf16> to vector<8x16xbf16>
    %67 = vector.extract_strided_slice %10 {offsets = [0, 48], sizes = [8, 16], strides = [1, 1]} : vector<8x64xbf16> to vector<8x16xbf16>
    %cst_20 = arith.constant dense<0.000000e+00> : vector<8x8xf32>
    %68 = tpu.matmul %65, %66, %cst_20 {dimension_numbers = #tpu.dot_dimension_numbers<[1], [1], [0], [0], [0, 0, 1, 0], [], []>} : vector<8x16xbf16>, vector<8x16xbf16>, vector<8x8xf32> -> vector<8x8xf32>
    %cst_21 = arith.constant dense<0xFF800000> : vector<8xf32>
    %69 = vector.multi_reduction <maximumf>, %68, %cst_21 [1] : vector<8x8xf32> to vector<8xf32>
    %70 = vector.shape_cast %69 : vector<8xf32> to vector<8x1xf32>
    %71 = vector.broadcast %70 : vector<8x1xf32> to vector<8x8xf32>
    %72 = arith.subf %68, %71 : vector<8x8xf32>
    %73 = math.exp %72 : vector<8x8xf32>
    %cst_22 = arith.constant dense<0.000000e+00> : vector<8xf32>
    %74 = vector.multi_reduction <add>, %73, %cst_22 [1] : vector<8x8xf32> to vector<8xf32>
    %75 = vector.shape_cast %74 : vector<8xf32> to vector<8x1xf32>
    %76 = tpu.reciprocal %75 {approx = true} : vector<8x1xf32> -> vector<8x1xf32>
    %77 = arith.truncf %73 : vector<8x8xf32> to vector<8x8xbf16>
    %cst_23 = arith.constant dense<0.000000e+00> : vector<8x16xf32>
    %78 = tpu.matmul %77, %67, %cst_23 {dimension_numbers = #tpu.dot_dimension_numbers<[1], [0], [0], [1], [0, 0, 1, 1], [], []>} : vector<8x8xbf16>, vector<8x16xbf16>, vector<8x16xf32> -> vector<8x16xf32>
    %79 = vector.broadcast %76 : vector<8x1xf32> to vector<8x16xf32>
    %80 = arith.mulf %78, %79 : vector<8x16xf32>
    %81 = arith.truncf %80 : vector<8x16xf32> to vector<8x16xbf16>
    %c0_24 = arith.constant 0 : index
    %c48 = arith.constant 48 : index
    %82 = vector.load %arg7[%c0_24, %c48] : memref<8x64xbf16, #tpu.memory_space<vmem>>, vector<8x16xbf16>
    tpu.vector_store %arg7[%c0_24, %c48], %81 {strides = array<i32>} : memref<8x64xbf16, #tpu.memory_space<vmem>>, vector<8x16xbf16>,
    %c0_25 = arith.constant 0 : index
    %c0_26 = arith.constant 0 : index
    %83 = vector.load %arg7[%c0_25, %c0_26] : memref<8x64xbf16, #tpu.memory_space<vmem>>, vector<8x64xbf16>
    %c0_27 = arith.constant 0 : index
    %c0_28 = arith.constant 0 : index
    %84 = vector.load %arg4[%c0_27, %c0_28] : memref<64x128xbf16, #tpu.memory_space<vmem>>, vector<64x128xbf16>
    %cst_29 = arith.constant dense<0.000000e+00> : vector<8x128xf32>
    %85 = tpu.matmul %83, %84, %cst_29 {dimension_numbers = #tpu.dot_dimension_numbers<[1], [0], [0], [1], [0, 0, 1, 1], [], []>} : vector<8x64xbf16>, vector<64x128xbf16>, vector<8x128xf32> -> vector<8x128xf32>
    %c0_30 = arith.constant 0 : index
    %c0_31 = arith.constant 0 : index
    %86 = vector.load %arg5[%c0_30, %c0_31] : memref<1x128xf32, #tpu.memory_space<vmem>>, vector<1x128xf32>
    %87 = vector.broadcast %86 : vector<1x128xf32> to vector<8x128xf32>
    %88 = arith.addf %85, %87 : vector<8x128xf32>
    %c0_32 = arith.constant 0 : index
    %c0_33 = arith.constant 0 : index
    %c0_34 = arith.constant 0 : index
    %89 = vector.load %arg6[%c0_32, %c0_33, %c0_34] : memref<1x8x128xf32, #tpu.memory_space<vmem>>, vector<1x8x128xf32>
    %90 = vector.shape_cast %89 : vector<1x8x128xf32> to vector<8x128xf32>
    %91 = vector.shape_cast %88 : vector<8x128xf32> to vector<1x8x128xf32>
    tpu.vector_store %arg6[%c0_32, %c0_33, %c0_34], %91 {strides = array<i32>} : memref<1x8x128xf32, #tpu.memory_space<vmem>>, vector<1x8x128xf32>,
    return
  }
  func.func @transform_0(%arg0: i32, %arg1: i32) -> (i32, i32, i32) {
    %c0_i32 = arith.constant 0 : i32
    %c0_i32_0 = arith.constant 0 : i32
    %c0_i32_1 = arith.constant 0 : i32
    return %arg0, %c0_i32, %c0_i32_0 : i32, i32, i32
  }
  func.func @transform_1(%arg0: i32, %arg1: i32) -> (i32, i32) {
    %c0_i32 = arith.constant 0 : i32
    %c0_i32_0 = arith.constant 0 : i32
    %c0_i32_1 = arith.constant 0 : i32
    return %c0_i32, %c0_i32_0 : i32, i32
  }
  func.func @transform_2(%arg0: i32, %arg1: i32) -> (i32, i32) {
    %c0_i32 = arith.constant 0 : i32
    %c0_i32_0 = arith.constant 0 : i32
    %c0_i32_1 = arith.constant 0 : i32
    return %c0_i32, %c0_i32_0 : i32, i32
  }
  func.func @transform_3(%arg0: i32, %arg1: i32) -> (i32, i32) {
    %c0_i32 = arith.constant 0 : i32
    %c0_i32_0 = arith.constant 0 : i32
    %c0_i32_1 = arith.constant 0 : i32
    return %c0_i32, %c0_i32_0 : i32, i32
  }
  func.func @transform_4(%arg0: i32, %arg1: i32) -> (i32, i32, i32) {
    %c0_i32 = arith.constant 0 : i32
    %c0_i32_0 = arith.constant 0 : i32
    return %arg0, %arg1, %c0_i32 : i32, i32, i32
  }
}

</mosaic_0001>

<llo_original>
// kernel: tpu_custom_call.1
$region0: #{tpu_custom_call.1}
  #allocation0 [shape = 'u32[]', space=smem, size = 0x4, offset = 0x4, fixed_abs, tag = 'smem constant byte address 0x4 - core index']
  #allocation1 [shape = 'u32[144,128]{1,0:T(1,128)}', space=vmem, size = 0x12000, scoped, tag = 'internal scratch']
  #allocation2 [shape = 'bf16[8,64]{1,0:T(8,128)(2,1)}', space=vmem, size = 0x800, scoped, tag = 'scratch operand']
  %s0 = inlined_call_operand.hbm [shape: bf16[2,8,32], index: 0, kind: input, shape index: {}]
  %s1 = inlined_call_operand.hbm [shape: bf16[32,192], index: 1, kind: input, shape index: {}]
  %s2 = inlined_call_operand.hbm [shape: bf16[64,128], index: 2, kind: input, shape index: {}]
  %s3 = inlined_call_operand.vmem [shape: f32[1,128], index: 3, kind: input, shape index: {}]
  %s4 = inlined_call_operand.hbm [shape: f32[2,8,128], index: 4, kind: output, shape index: {}]
  %s5 = sld [smem:[#allocation0]]
  $region61: #{tpu_custom_call.1} parent=0
    _
  %s7 = ssub.s32 1, %s5
  %s8 = scalar_select 0, %s7, %s5
  $region1: #{tpu_custom_call.1} parent=0
    #allocation3 [shape = 'u8[4096]{0}', space=vmem, size = 0x1000, scoped, tag = 'input window, operand 0']
    #allocation4 [shape = 's32[2]{0}', space=sflag, size = 0x8, scoped, tag = 'scoped memory for tpu_custom_call.1']
    #allocation5 [shape = 's32[2]{0}', space=sflag, size = 0x8, scoped, tag = 'scoped memory for tpu_custom_call.1']
    #allocation6 [shape = 'u8[16384]{0}', space=vmem, size = 0x4000, scoped, tag = 'input window, operand 1, single buffered']
    #allocation7 [shape = 's32[1]{0}', space=sflag, size = 0x4, scoped, tag = 'scoped memory for tpu_custom_call.1']
    #allocation8 [shape = 'u8[16384]{0}', space=vmem, size = 0x4000, scoped, tag = 'input window, operand 2, single buffered']
    #allocation9 [shape = 'u8[8192]{0}', space=vmem, size = 0x2000, scoped, tag = 'output window, operand 0']
    %9 = vsyncpa [#allocation4], 0
    %s10 = scalar_lea.sflag [#allocation4], 1
    %11 = vsyncpa %s10, 0
    %12 = vsyncpa [#allocation7], 0
    %13 = vsyncpa [#allocation5], 0
    %s14 = scalar_lea.sflag [#allocation5], 1
    %15 = vsyncpa %s14, 0
    loop: start=0, step=1, limit=4
    $region2: #{tpu_custom_call.1} parent=1 // loop_pre_header
      _
    $region3: #{tpu_custom_call.1} parent=1 // loop_header
      %s17 = sphi 0, %s21
      %p18 = scmp.ge.s32.totalorder %s17, 4
      %s24 = sphi 0, %s36
      %s25 = sphi 0, %s32
      %s26 = sphi 0, %s24
      %s27 = sphi 0, %s25
      %s28 = sphi 0, %s26
      %s29 = sphi 0, %s27
      %s39 = sphi 0, %s41
      %s42 = sphi 0, %s39
      %s43 = sphi 0, %s42
      %s59 = sphi 0, %s43
      %s63 = sphi 0, %s63
      %s65 = sphi 0, %s63
      %s66 = sphi 0, %s65
      %s80 = sphi 0, %s66
      %s84 = sphi 0, %s84
      %s86 = sphi 0, %s84
      %s87 = sphi 0, %s86
      %s101 = sphi 0, %s87
      %s105 = sphi 0, %s105
      %s107 = sphi 0, %s105
      %s108 = sphi 0, %s107
      %s122 = sphi 0, %s108
      %s130 = sphi 0, %s132
      %s133 = sphi 0, %s130
      %s134 = sphi 0, %s133
      %s150 = sphi 0, %s134
    $region4: #{tpu_custom_call.1} parent=1 // loop_header_branch
      %20 = sbr.rel (%p18) target = $region8
    $region5: #{tpu_custom_call.1} parent=1 // loop_body
      %s22 = ssub.s32 %s17, 1
      %s23 = ssub.s32 %s17, 2
      %s30 = sadd.s32 1, %s25
      %p31 = scmp.ge.s32.totalorder %s30, 1
      %s32 = scalar_select %p31, 0, %s30
      %s33 = sadd.s32 1, %s24
      %s34 = scalar_select %p31, %s33, %s24
      %p35 = scmp.ge.s32.totalorder %s34, 2
      %s36 = scalar_select %p35, 0, %s34
      %s37 = ssub.s32 %s24, %s36
      %p38 = scmp.eq.s32.totalorder %s37, 0
      %s40 = sadd.s32 %s39, 1
      %s41 = scalar_select %p38, %s39, %s40
      %p44 = pneg %p38
      %p45 = scmp.eq.s32.totalorder %s17, 1
      %p46 = por %p44, %p45
      %p47 = scmp.ne.s32.totalorder %s39, %s42
      %p48 = scmp.eq.s32.totalorder %s17, 0
      %p49 = por %p47, %p48
      %p50 = scmp.ne.s32.totalorder %s39, %s42
      %p51 = scmp.eq.s32.totalorder %s22, 1
      %p52 = por %p50, %p51
      %p53 = scmp.ne.s32.totalorder %s42, %s43
      %p54 = scmp.eq.s32.totalorder %s22, 0
      %p55 = por %p53, %p54
      %p56 = scmp.ne.s32.totalorder %s42, %s43
      %p57 = scmp.eq.s32.totalorder %s23, 1
      %p58 = por %p56, %p57
      %p60 = scmp.ne.s32.totalorder %s43, %s59
      %p61 = scmp.eq.s32.totalorder %s23, 0
      %p62 = por %p60, %p61
      %s64 = sadd.s32 %s63, 1
      %p67 = scmp.eq.s32.totalorder %s17, 1
      %p68 = scmp.ne.s32.totalorder %s63, %s65
      %p69 = scmp.eq.s32.totalorder %s17, 0
      %p70 = por %p68, %p69
      %p71 = scmp.ne.s32.totalorder %s63, %s65
      %p72 = scmp.eq.s32.totalorder %s22, 1
      %p73 = por %p71, %p72
      %p74 = scmp.ne.s32.totalorder %s65, %s66
      %p75 = scmp.eq.s32.totalorder %s22, 0
      %p76 = por %p74, %p75
      %p77 = scmp.ne.s32.totalorder %s65, %s66
      %p78 = scmp.eq.s32.totalorder %s23, 1
      %p79 = por %p77, %p78
      %p81 = scmp.ne.s32.totalorder %s66, %s80
      %p82 = scmp.eq.s32.totalorder %s23, 0
      %p83 = por %p81, %p82
      %s85 = sadd.s32 %s84, 1
      %p88 = scmp.eq.s32.totalorder %s17, 1
      %p89 = scmp.ne.s32.totalorder %s84, %s86
      %p90 = scmp.eq.s32.totalorder %s17, 0
      %p91 = por %p89, %p90
      %p92 = scmp.ne.s32.totalorder %s84, %s86
      %p93 = scmp.eq.s32.totalorder %s22, 1
      %p94 = por %p92, %p93
      %p95 = scmp.ne.s32.totalorder %s86, %s87
      %p96 = scmp.eq.s32.totalorder %s22, 0
      %p97 = por %p95, %p96
      %p98 = scmp.ne.s32.totalorder %s86, %s87
      %p99 = scmp.eq.s32.totalorder %s23, 1
      %p100 = por %p98, %p99
      %p102 = scmp.ne.s32.totalorder %s87, %s101
      %p103 = scmp.eq.s32.totalorder %s23, 0
      %p104 = por %p102, %p103
      %s106 = sadd.s32 %s105, 1
      %p109 = scmp.eq.s32.totalorder %s17, 1
      %p110 = scmp.ne.s32.totalorder %s105, %s107
      %p111 = scmp.eq.s32.totalorder %s17, 0
      %p112 = por %p110, %p111
      %p113 = scmp.ne.s32.totalorder %s105, %s107
      %p114 = scmp.eq.s32.totalorder %s22, 1
      %p115 = por %p113, %p114
      %p116 = scmp.ne.s32.totalorder %s107, %s108
      %p117 = scmp.eq.s32.totalorder %s22, 0
      %p118 = por %p116, %p117
      %p119 = scmp.ne.s32.totalorder %s107, %s108
      %p120 = scmp.eq.s32.totalorder %s23, 1
      %p121 = por %p119, %p120
      %p123 = scmp.ne.s32.totalorder %s108, %s122
      %p124 = scmp.eq.s32.totalorder %s23, 0
      %p125 = por %p123, %p124
      %s126 = ssub.s32 %s24, %s36
      %s127 = ssub.s32 %s25, %s32
      %s128 = sor.u32 %s126, %s127
      %p129 = scmp.eq.s32.totalorder %s128, 0
      %s131 = sadd.s32 %s130, 1
      %s132 = scalar_select %p129, %s130, %s131
      %p135 = pneg %p129
      %p136 = scmp.eq.s32.totalorder %s17, 1
      %p137 = por %p135, %p136
      %p138 = scmp.ne.s32.totalorder %s130, %s133
      %p139 = scmp.eq.s32.totalorder %s17, 0
      %p140 = por %p138, %p139
      %p141 = scmp.ne.s32.totalorder %s130, %s133
      %p142 = scmp.eq.s32.totalorder %s22, 1
      %p143 = por %p141, %p142
      %p144 = scmp.ne.s32.totalorder %s133, %s134
      %p145 = scmp.eq.s32.totalorder %s22, 0
      %p146 = por %p144, %p145
      %p147 = scmp.ne.s32.totalorder %s133, %s134
      %p148 = scmp.eq.s32.totalorder %s23, 1
      %p149 = por %p147, %p148
      %p151 = scmp.ne.s32.totalorder %s134, %s150
      %p152 = scmp.eq.s32.totalorder %s23, 0
      %p153 = por %p151, %p152
      %p154 = scmp.le.s32.totalorder 1, %s17
      %p155 = scmp.lt.s32.totalorder %s17, 3
      %p156 = pnand %p154, %p155
      %p157 = pneg %p156
      // Predicated region
      $region9: #{tpu_custom_call.1} parent=5 // pred_check
        _
      $region10: #{tpu_custom_call.1} parent=5 // pred_check_branch
        %159 = sbr.rel (%p156) target = $region12
      $region11: #{tpu_custom_call.1} parent=5 // pred_region
        %s160 = ssub.s32 %s17, 1
        // Predicated region
        $region13: #{tpu_custom_call.1} parent=11 // pred_check
          %p161 = pneg %p76
        $region14: #{tpu_custom_call.1} parent=11 // pred_check_branch
          %163 = sbr.rel (%p161) target = $region16
        $region15: #{tpu_custom_call.1} parent=11 // pred_region
          %s165 = ssub.s32 512, 512
          %166 = vsyncadd [#allocation7], %s165
          %s167 = sshll.u32 [#allocation6], 4
          %s168 = int_to_ptr.vmem [resolvable:$true] %s167
          %173 = dma.hbm_to_vmem [thread:$0]  %s1, 512, %s168, [#allocation7], 128, 128, 8
        $region16: #{tpu_custom_call.1} parent=11 // pred_fallthru
          _
        // Predicated region
        $region17: #{tpu_custom_call.1} parent=11 // pred_check
          %p174 = pneg %p97
        $region18: #{tpu_custom_call.1} parent=11 // pred_check_branch
          %176 = sbr.rel (%p174) target = $region20
        $region19: #{tpu_custom_call.1} parent=11 // pred_region
          %s178 = ssub.s32 512, 512
          %179 = vsyncadd [#allocation7], %s178
          %s180 = sshll.u32 [#allocation8], 4
          %s181 = int_to_ptr.vmem [resolvable:$true] %s180
          %186 = dma.hbm_to_vmem [thread:$0]  %s2, 512, %s181, [#allocation7], 64, 64, 4
        $region20: #{tpu_custom_call.1} parent=11 // pred_fallthru
          _
        // Predicated region
        $region21: #{tpu_custom_call.1} parent=11 // pred_check
          %p187 = pneg %p118
        $region22: #{tpu_custom_call.1} parent=11 // pred_check_branch
          %189 = sbr.rel (%p187) target = $region24
        $region23: #{tpu_custom_call.1} parent=11 // pred_region
          _
        $region24: #{tpu_custom_call.1} parent=11 // pred_fallthru
          _
      $region12: #{tpu_custom_call.1} parent=5 // pred_fallthru
        _
      %p190 = scmp.lt.s32.totalorder %s17, 2
      // Predicated region
      $region25: #{tpu_custom_call.1} parent=5 // pred_check
        %p191 = pneg %p190
      $region26: #{tpu_custom_call.1} parent=5 // pred_check_branch
        %193 = sbr.rel (%p191) target = $region28
      $region27: #{tpu_custom_call.1} parent=5 // pred_region
        // Predicated region
        $region29: #{tpu_custom_call.1} parent=27 // pred_check
          %p194 = pneg %p49
        $region30: #{tpu_custom_call.1} parent=27 // pred_check_branch
          %196 = sbr.rel (%p194) target = $region32
        $region31: #{tpu_custom_call.1} parent=27 // pred_region
          %s197 = sand.u32 %s39, 1
          %s198 = scalar_lea.sflag [#allocation4], %s197
          %s199 = sand.u32 %s39, 1
          %s200 = smul.addr %s199, 4
          %s201 = scalar_lea.vmem [#allocation3], %s200
          %s203 = ssub.s32 64, 64
          %204 = vsyncadd %s198, %s203
          %s205 = smul.addr %s24, 64
          %s206 = scalar_lea.hbm %s0, %s205
          %s208 = sshll.u32 %s201, 4
          %s209 = int_to_ptr.vmem [resolvable:$true] %s208
          %211 = dma.hbm_to_vmem [thread:$0]  %s206, 64, %s209, %s198
        $region32: #{tpu_custom_call.1} parent=27 // pred_fallthru
          _
      $region28: #{tpu_custom_call.1} parent=5 // pred_fallthru
        _
      %p212 = scmp.le.s32.totalorder 1, %s17
      %p213 = scmp.lt.s32.totalorder %s17, 3
      %p214 = pnand %p212, %p213
      %p215 = pneg %p214
      // Predicated region
      $region33: #{tpu_custom_call.1} parent=5 // pred_check
        _
      $region34: #{tpu_custom_call.1} parent=5 // pred_check_branch
        %217 = sbr.rel (%p214) target = $region36
      $region35: #{tpu_custom_call.1} parent=5 // pred_region
        %s218 = ssub.s32 %s17, 1
        %s219 = sand.u32 %s42, 1
        %s220 = scalar_lea.sflag [#allocation4], %s219
        %s221 = sand.u32 %s42, 1
        %s222 = smul.addr %s221, 4
        %s223 = scalar_lea.vmem [#allocation3], %s222
        // Predicated region
        $region37: #{tpu_custom_call.1} parent=35 // pred_check
          %p224 = pneg %p55
        $region38: #{tpu_custom_call.1} parent=35 // pred_check_branch
          %226 = sbr.rel (%p224) target = $region40
        $region39: #{tpu_custom_call.1} parent=35 // pred_region
          %227 = dma.done %s220, 64
        $region40: #{tpu_custom_call.1} parent=35 // pred_fallthru
          _
        // Predicated region
        $region41: #{tpu_custom_call.1} parent=35 // pred_check
          %p228 = pneg %p76
        $region42: #{tpu_custom_call.1} parent=35 // pred_check_branch
          %230 = sbr.rel (%p228) target = $region44
        $region43: #{tpu_custom_call.1} parent=35 // pred_region
          %231 = dma.done [#allocation7], 512
        $region44: #{tpu_custom_call.1} parent=35 // pred_fallthru
          _
        // Predicated region
        $region45: #{tpu_custom_call.1} parent=35 // pred_check
          %p232 = pneg %p97
        $region46: #{tpu_custom_call.1} parent=35 // pred_check_branch
          %234 = sbr.rel (%p232) target = $region48
        $region47: #{tpu_custom_call.1} parent=35 // pred_region
          %235 = dma.done [#allocation7], 512
        $region48: #{tpu_custom_call.1} parent=35 // pred_fallthru
          _
        %s236 = sand.u32 %s42, 1
        %s237 = scalar_lea.sflag [#allocation4], %s236
        %s238 = sand.u32 %s42, 1
        %s239 = smul.addr %s238, 4
        %s240 = scalar_lea.vmem [#allocation3], %s239
        %p241 = pneg %p55
        %p242 = pneg %p52
        %p243 = pneg %p76
        %p244 = pneg %p73
        %p245 = pneg %p97
        %p246 = pneg %p94
        %p247 = pneg %p118
        %p248 = pneg %p115
        %p249 = pneg %p146
        %p250 = pneg %p143
        %s251 = sand.u32 %s133, 1
        %s252 = scalar_lea.sflag [#allocation5], %s251
        %s253 = sand.u32 %s133, 1
        %s254 = smul.addr %s253, 8
        %s255 = scalar_lea.vmem [#allocation9], %s254
        %v257 = vld [vmem:[%s223] sm:$0xf]
        %v258 = vld [vmem:[#allocation6] sm:$0xff]
        %v259 = vld [vmem:[#allocation6 + $0x8] sm:$0xff]
        %v260 = vld [vmem:[#allocation6 + $0x10] sm:$0xff]
        %v261 = vld [vmem:[#allocation6 + $0x18] sm:$0xff]
        %v266 = vunpack.c.l.b16 %v258
        %v267 = vunpack.c.h.b16 %v258
        %v268 = vunpack.c.l.b16 %v259
        %v269 = vunpack.c.h.b16 %v259
        %v270 = vunpack.c.l.b16 %v260
        %v271 = vunpack.c.h.b16 %v260
        %v272 = vunpack.c.l.b16 %v261
        %v273 = vunpack.c.h.b16 %v261
        %v274 = vpack.c.b16 %v268, %v266
        %v275 = vpack.c.b16 %v269, %v267
        %v276 = vpack.c.b16 %v272, %v270
        %v277 = vpack.c.b16 %v273, %v271
        %vm282 = vcmask 261120
        %v284 = vsel %vm282, %v257, 0
        %286 = vmatprep.subr.bf16.mxu0 %v275
        %287 = vmatpush1.bf16.msra.mxu0 %v274
        %288 = vmatprep.subr.bf16.mxu0 %v277
        %289 = vmatpush1.bf16.msra.mxu0 %v276
        %290 = vmatprep.subr.bf16.mxu0 0
        %291 = vmatpush1.bf16.msra.mxu0 0
        %292 = vmatprep.subr.bf16.mxu0 0
        %293 = vmatpush1.bf16.msra.mxu0 0
        %294 = vmatprep.subr.bf16.mxu0 0
        %295 = vmatpush1.bf16.msra.mxu0 0
        %296 = vmatprep.subr.bf16.mxu0 0
        %297 = vmatpush1.bf16.msra.mxu0 0
        %298 = vmatprep.subr.bf16.mxu0 0
        %299 = vmatpush1.bf16.msra.mxu0 0
        %300 = vmatprep.subr.bf16.mxu0 0
        %301 = vmatpush1.bf16.msra.mxu0 0
        %302 = vmatprep.subr.bf16.mxu0 0
        %303 = vmatpush1.bf16.msra.mxu0 0
        %304 = vmatprep.subr.bf16.mxu0 0
        %305 = vmatpush1.bf16.msra.mxu0 0
        %306 = vmatprep.subr.bf16.mxu0 0
        %307 = vmatpush1.bf16.msra.mxu0 0
        %308 = vmatprep.subr.bf16.mxu0 0
        %309 = vmatpush1.bf16.msra.mxu0 0
        %310 = vmatprep.subr.bf16.mxu0 0
        %311 = vmatpush1.bf16.msra.mxu0 0
        %312 = vmatprep.subr.bf16.mxu0 0
        %313 = vmatpush1.bf16.msra.mxu0 0
        %314 = vmatprep.subr.bf16.mxu0 0
        %315 = vmatpush1.bf16.msra.mxu0 0
        %316 = vmatprep.subr.bf16.mxu0 0
        %317 = vmatpush1.bf16.msra.mxu0 0
        %318 = vmatprep.mubr.bf16.mxu0 0
        %319 = vmatmul.mubr.bf16.gmra.mrb[0].mxu0 %v284
        %v320 = vpop.f32.mrb[0].mxu0
        %v321 = vadd.f32 0.0, %v320
        %v322 = vpop.f32.mrb[0].mxu0
        %v323 = vadd.f32 0.0, %v322
        %v324 = vpop.f32.mrb[0].mxu0
        %v325 = vpop.f32.mrb[0].mxu0
        %326 = vdwg.mxu0
        %v327 = vpack.c.bf16 %v321, %v321
        %v328 = vpack.c.bf16 %v323, %v323
        %330 = vrot.lane.b32.xlu0 %v327, 64
        %v331 = vpop.permute.xlu0 %330
        %vm332 = vcmask 130048
        %v334 = vsel %vm332, %v327, 0
        %v337 = vsel %vm332, %v331, 0
        %339 = vmatprep.subr.bf16.mxu0 0
        %340 = vmatpush1.bf16.xpose.msra.mxu0 %v337
        %341 = vmatprep.subr.bf16.mxu0 0
        %342 = vmatpush1.bf16.xpose.msra.mxu0 0
        %343 = vmatprep.subr.bf16.mxu0 0
        %344 = vmatpush1.bf16.xpose.msra.mxu0 0
        %345 = vmatprep.subr.bf16.mxu0 0
        %346 = vmatpush1.bf16.xpose.msra.mxu0 0
        %347 = vmatprep.subr.bf16.mxu0 0
        %348 = vmatpush1.bf16.xpose.msra.mxu0 0
        %349 = vmatprep.subr.bf16.mxu0 0
        %350 = vmatpush1.bf16.xpose.msra.mxu0 0
        %351 = vmatprep.subr.bf16.mxu0 0
        %352 = vmatpush1.bf16.xpose.msra.mxu0 0
        %353 = vmatprep.subr.bf16.mxu0 0
        %354 = vmatpush1.bf16.xpose.msra.mxu0 0
        %355 = vmatprep.subr.bf16.mxu0 0
        %356 = vmatpush1.bf16.xpose.msra.mxu0 0
        %357 = vmatprep.subr.bf16.mxu0 0
        %358 = vmatpush1.bf16.xpose.msra.mxu0 0
        %359 = vmatprep.subr.bf16.mxu0 0
        %360 = vmatpush1.bf16.xpose.msra.mxu0 0
        %361 = vmatprep.subr.bf16.mxu0 0
        %362 = vmatpush1.bf16.xpose.msra.mxu0 0
        %363 = vmatprep.subr.bf16.mxu0 0
        %364 = vmatpush1.bf16.xpose.msra.mxu0 0
        %365 = vmatprep.subr.bf16.mxu0 0
        %366 = vmatpush1.bf16.xpose.msra.mxu0 0
        %367 = vmatprep.subr.bf16.mxu0 0
        %368 = vmatpush1.bf16.xpose.msra.mxu0 0
        %369 = vmatprep.subr.bf16.mxu0 0
        %370 = vmatpush1.bf16.xpose.msra.mxu0 0
        %371 = vmatprep.mubr.bf16.mxu0 0
        %372 = vmatmul.mubr.bf16.gmra.mrb[0].mxu0 %v334
        %v373 = vpop.f32.mrb[0].mxu0
        %v374 = vadd.f32 0.0, %v373
        %v375 = vpop.f32.mrb[0].mxu0
        %v376 = vpop.f32.mrb[0].mxu0
        %v377 = vpop.f32.mrb[0].mxu0
        %378 = vdwg.mxu0
        %vm379 = vcmask 64512
        %v380 = vsel %vm379, %v374, -inf
        %381 = vmax.xlane.f32.xlu0 %v380
        %v382 = vpop.xlane.xlu0 %381
        %v383 = vsub.f32 %v374, %v382
        %v384 = vmul.f32 %v383, 1.442695
        %v385 = vpow.pop %v384
        %v386 = vsel %vm379, %v385, 0.0
        %387 = vadd.xlane.f32.xlu0 %v386
        %v388 = vpop.xlane.xlu0 %387
        %v389 = vrcp.pop %v388
        %v390 = vpack.c.bf16 %v385, %v385
        %v392 = vsel %vm379, %v390, 0
        %vm394 = vcmask 1043456
        %v396 = vsel %vm394, %v328, 0
        %398 = vmatprep.subr.bf16.mxu0 0
        %399 = vmatpush1.bf16.msra.mxu0 %v396
        %400 = vmatprep.subr.bf16.mxu0 0
        %401 = vmatpush1.bf16.msra.mxu0 0
        %402 = vmatprep.subr.bf16.mxu0 0
        %403 = vmatpush1.bf16.msra.mxu0 0
        %404 = vmatprep.subr.bf16.mxu0 0
        %405 = vmatpush1.bf16.msra.mxu0 0
        %406 = vmatprep.subr.bf16.mxu0 0
        %407 = vmatpush1.bf16.msra.mxu0 0
        %408 = vmatprep.subr.bf16.mxu0 0
        %409 = vmatpush1.bf16.msra.mxu0 0
        %410 = vmatprep.subr.bf16.mxu0 0
        %411 = vmatpush1.bf16.msra.mxu0 0
        %412 = vmatprep.subr.bf16.mxu0 0
        %413 = vmatpush1.bf16.msra.mxu0 0
        %414 = vmatprep.subr.bf16.mxu0 0
        %415 = vmatpush1.bf16.msra.mxu0 0
        %416 = vmatprep.subr.bf16.mxu0 0
        %417 = vmatpush1.bf16.msra.mxu0 0
        %418 = vmatprep.subr.bf16.mxu0 0
        %419 = vmatpush1.bf16.msra.mxu0 0
        %420 = vmatprep.subr.bf16.mxu0 0
        %421 = vmatpush1.bf16.msra.mxu0 0
        %422 = vmatprep.subr.bf16.mxu0 0
        %423 = vmatpush1.bf16.msra.mxu0 0
        %424 = vmatprep.subr.bf16.mxu0 0
        %425 = vmatpush1.bf16.msra.mxu0 0
        %426 = vmatprep.subr.bf16.mxu0 0
        %427 = vmatpush1.bf16.msra.mxu0 0
        %428 = vmatprep.subr.bf16.mxu0 0
        %429 = vmatpush1.bf16.msra.mxu0 0
        %430 = vmatprep.mubr.bf16.mxu0 0
        %431 = vmatmul.mubr.bf16.gmra.mrb[0].mxu0 %v392
        %v432 = vpop.f32.mrb[0].mxu0
        %v433 = vadd.f32 0.0, %v432
        %v434 = vpop.f32.mrb[0].mxu0
        %v435 = vpop.f32.mrb[0].mxu0
        %v436 = vpop.f32.mrb[0].mxu0
        %437 = vdwg.mxu0
        %v438 = vmul.f32 %v433, %v389
        %v439 = vpack.c.bf16 %v438, %v438
        %vm440 = vcmask 125952
        %441 = vst.msk [vmem:[#allocation2] sm:$0xf] %vm440, %v439
        %442 = vrot.lane.b32.xlu0 %v327, 112
        %v443 = vpop.permute.xlu0 %442
        %444 = vrot.lane.b32.xlu0 %v327, 48
        %v445 = vpop.permute.xlu0 %444
        %v447 = vsel %vm332, %v443, 0
        %v450 = vsel %vm332, %v445, 0
        %452 = vmatprep.subr.bf16.mxu0 0
        %453 = vmatpush1.bf16.xpose.msra.mxu0 %v450
        %454 = vmatprep.subr.bf16.mxu0 0
        %455 = vmatpush1.bf16.xpose.msra.mxu0 0
        %456 = vmatprep.subr.bf16.mxu0 0
        %457 = vmatpush1.bf16.xpose.msra.mxu0 0
        %458 = vmatprep.subr.bf16.mxu0 0
        %459 = vmatpush1.bf16.xpose.msra.mxu0 0
        %460 = vmatprep.subr.bf16.mxu0 0
        %461 = vmatpush1.bf16.xpose.msra.mxu0 0
        %462 = vmatprep.subr.bf16.mxu0 0
        %463 = vmatpush1.bf16.xpose.msra.mxu0 0
        %464 = vmatprep.subr.bf16.mxu0 0
        %465 = vmatpush1.bf16.xpose.msra.mxu0 0
        %466 = vmatprep.subr.bf16.mxu0 0
        %467 = vmatpush1.bf16.xpose.msra.mxu0 0
        %468 = vmatprep.subr.bf16.mxu0 0
        %469 = vmatpush1.bf16.xpose.msra.mxu0 0
        %470 = vmatprep.subr.bf16.mxu0 0
        %471 = vmatpush1.bf16.xpose.msra.mxu0 0
        %472 = vmatprep.subr.bf16.mxu0 0
        %473 = vmatpush1.bf16.xpose.msra.mxu0 0
        %474 = vmatprep.subr.bf16.mxu0 0
        %475 = vmatpush1.bf16.xpose.msra.mxu0 0
        %476 = vmatprep.subr.bf16.mxu0 0
        %477 = vmatpush1.bf16.xpose.msra.mxu0 0
        %478 = vmatprep.subr.bf16.mxu0 0
        %479 = vmatpush1.bf16.xpose.msra.mxu0 0
        %480 = vmatprep.subr.bf16.mxu0 0
        %481 = vmatpush1.bf16.xpose.msra.mxu0 0
        %482 = vmatprep.subr.bf16.mxu0 0
        %483 = vmatpush1.bf16.xpose.msra.mxu0 0
        %484 = vmatprep.mubr.bf16.mxu0 0
        %485 = vmatmul.mubr.bf16.gmra.mrb[0].mxu0 %v447
        %v486 = vpop.f32.mrb[0].mxu0
        %v487 = vadd.f32 0.0, %v486
        %v488 = vpop.f32.mrb[0].mxu0
        %v489 = vpop.f32.mrb[0].mxu0
        %v490 = vpop.f32.mrb[0].mxu0
        %491 = vdwg.mxu0
        %v492 = vsel %vm379, %v487, -inf
        %493 = vmax.xlane.f32.xlu0 %v492
        %v494 = vpop.xlane.xlu0 %493
        %v495 = vsub.f32 %v487, %v494
        %v496 = vmul.f32 %v495, 1.442695
        %v497 = vpow.pop %v496
        %v498 = vsel %vm379, %v497, 0.0
        %499 = vadd.xlane.f32.xlu0 %v498
        %v500 = vpop.xlane.xlu0 %499
        %v501 = vrcp.pop %v500
        %v502 = vpack.c.bf16 %v497, %v497
        %504 = vrot.lane.b32.xlu0 %v328, 112
        %v505 = vpop.permute.xlu0 %504
        %v507 = vsel %vm379, %v502, 0
        %v510 = vsel %vm394, %v505, 0
        %512 = vmatprep.subr.bf16.mxu0 0
        %513 = vmatpush1.bf16.msra.mxu0 %v510
        %514 = vmatprep.subr.bf16.mxu0 0
        %515 = vmatpush1.bf16.msra.mxu0 0
        %516 = vmatprep.subr.bf16.mxu0 0
        %517 = vmatpush1.bf16.msra.mxu0 0
        %518 = vmatprep.subr.bf16.mxu0 0
        %519 = vmatpush1.bf16.msra.mxu0 0
        %520 = vmatprep.subr.bf16.mxu0 0
        %521 = vmatpush1.bf16.msra.mxu0 0
        %522 = vmatprep.subr.bf16.mxu0 0
        %523 = vmatpush1.bf16.msra.mxu0 0
        %524 = vmatprep.subr.bf16.mxu0 0
        %525 = vmatpush1.bf16.msra.mxu0 0
        %526 = vmatprep.subr.bf16.mxu0 0
        %527 = vmatpush1.bf16.msra.mxu0 0
        %528 = vmatprep.subr.bf16.mxu0 0
        %529 = vmatpush1.bf16.msra.mxu0 0
        %530 = vmatprep.subr.bf16.mxu0 0
        %531 = vmatpush1.bf16.msra.mxu0 0
        %532 = vmatprep.subr.bf16.mxu0 0
        %533 = vmatpush1.bf16.msra.mxu0 0
        %534 = vmatprep.subr.bf16.mxu0 0
        %535 = vmatpush1.bf16.msra.mxu0 0
        %536 = vmatprep.subr.bf16.mxu0 0
        %537 = vmatpush1.bf16.msra.mxu0 0
        %538 = vmatprep.subr.bf16.mxu0 0
        %539 = vmatpush1.bf16.msra.mxu0 0
        %540 = vmatprep.subr.bf16.mxu0 0
        %541 = vmatpush1.bf16.msra.mxu0 0
        %542 = vmatprep.subr.bf16.mxu0 0
        %543 = vmatpush1.bf16.msra.mxu0 0
        %544 = vmatprep.mubr.bf16.mxu0 0
        %545 = vmatmul.mubr.bf16.gmra.mrb[0].mxu0 %v507
        %v546 = vpop.f32.mrb[0].mxu0
        %v547 = vadd.f32 0.0, %v546
        %v548 = vpop.f32.mrb[0].mxu0
        %v549 = vpop.f32.mrb[0].mxu0
        %v550 = vpop.f32.mrb[0].mxu0
        %551 = vdwg.mxu0
        %v552 = vmul.f32 %v547, %v501
        %v553 = vpack.c.bf16 %v552, %v552
        %v555 = vunpack.c.l.b16 %v553
        %v556 = vpack.c.b16 %v555, %v555
        %557 = vrot.lane.b32.xlu0 %v556, 16
        %v558 = vpop.permute.xlu0 %557
        %vm560 = vcmask 257152
        %561 = vst.msk [vmem:[#allocation2] sm:$0xf] %vm560, %v558
        %562 = vrot.lane.b32.xlu0 %v327, 96
        %v563 = vpop.permute.xlu0 %562
        %564 = vrot.lane.b32.xlu0 %v327, 32
        %v565 = vpop.permute.xlu0 %564
        %v567 = vsel %vm332, %v563, 0
        %v570 = vsel %vm332, %v565, 0
        %572 = vmatprep.subr.bf16.mxu0 0
        %573 = vmatpush1.bf16.xpose.msra.mxu0 %v570
        %574 = vmatprep.subr.bf16.mxu0 0
        %575 = vmatpush1.bf16.xpose.msra.mxu0 0
        %576 = vmatprep.subr.bf16.mxu0 0
        %577 = vmatpush1.bf16.xpose.msra.mxu0 0
        %578 = vmatprep.subr.bf16.mxu0 0
        %579 = vmatpush1.bf16.xpose.msra.mxu0 0
        %580 = vmatprep.subr.bf16.mxu0 0
        %581 = vmatpush1.bf16.xpose.msra.mxu0 0
        %582 = vmatprep.subr.bf16.mxu0 0
        %583 = vmatpush1.bf16.xpose.msra.mxu0 0
        %584 = vmatprep.subr.bf16.mxu0 0
        %585 = vmatpush1.bf16.xpose.msra.mxu0 0
        %586 = vmatprep.subr.bf16.mxu0 0
        %587 = vmatpush1.bf16.xpose.msra.mxu0 0
        %588 = vmatprep.subr.bf16.mxu0 0
        %589 = vmatpush1.bf16.xpose.msra.mxu0 0
        %590 = vmatprep.subr.bf16.mxu0 0
        %591 = vmatpush1.bf16.xpose.msra.mxu0 0
        %592 = vmatprep.subr.bf16.mxu0 0
        %593 = vmatpush1.bf16.xpose.msra.mxu0 0
        %594 = vmatprep.subr.bf16.mxu0 0
        %595 = vmatpush1.bf16.xpose.msra.mxu0 0
        %596 = vmatprep.subr.bf16.mxu0 0
        %597 = vmatpush1.bf16.xpose.msra.mxu0 0
        %598 = vmatprep.subr.bf16.mxu0 0
        %599 = vmatpush1.bf16.xpose.msra.mxu0 0
        %600 = vmatprep.subr.bf16.mxu0 0
        %601 = vmatpush1.bf16.xpose.msra.mxu0 0
        %602 = vmatprep.subr.bf16.mxu0 0
        %603 = vmatpush1.bf16.xpose.msra.mxu0 0
        %604 = vmatprep.mubr.bf16.mxu0 0
        %605 = vmatmul.mubr.bf16.gmra.mrb[0].mxu0 %v567
        %v606 = vpop.f32.mrb[0].mxu0
        %v607 = vadd.f32 0.0, %v606
        %v608 = vpop.f32.mrb[0].mxu0
        %v609 = vpop.f32.mrb[0].mxu0
        %v610 = vpop.f32.mrb[0].mxu0
        %611 = vdwg.mxu0
        %v612 = vsel %vm379, %v607, -inf
        %613 = vmax.xlane.f32.xlu0 %v612
        %v614 = vpop.xlane.xlu0 %613
        %v615 = vsub.f32 %v607, %v614
        %v616 = vmul.f32 %v615, 1.442695
        %v617 = vpow.pop %v616
        %v618 = vsel %vm379, %v617, 0.0
        %619 = vadd.xlane.f32.xlu0 %v618
        %v620 = vpop.xlane.xlu0 %619
        %v621 = vrcp.pop %v620
        %v622 = vpack.c.bf16 %v617, %v617
        %623 = vrot.lane.b32.xlu0 %v328, 96
        %v624 = vpop.permute.xlu0 %623
        %v626 = vsel %vm379, %v622, 0
        %v629 = vsel %vm394, %v624, 0
        %631 = vmatprep.subr.bf16.mxu0 0
        %632 = vmatpush1.bf16.msra.mxu0 %v629
        %633 = vmatprep.subr.bf16.mxu0 0
        %634 = vmatpush1.bf16.msra.mxu0 0
        %635 = vmatprep.subr.bf16.mxu0 0
        %636 = vmatpush1.bf16.msra.mxu0 0
        %637 = vmatprep.subr.bf16.mxu0 0
        %638 = vmatpush1.bf16.msra.mxu0 0
        %639 = vmatprep.subr.bf16.mxu0 0
        %640 = vmatpush1.bf16.msra.mxu0 0
        %641 = vmatprep.subr.bf16.mxu0 0
        %642 = vmatpush1.bf16.msra.mxu0 0
        %643 = vmatprep.subr.bf16.mxu0 0
        %644 = vmatpush1.bf16.msra.mxu0 0
        %645 = vmatprep.subr.bf16.mxu0 0
        %646 = vmatpush1.bf16.msra.mxu0 0
        %647 = vmatprep.subr.bf16.mxu0 0
        %648 = vmatpush1.bf16.msra.mxu0 0
        %649 = vmatprep.subr.bf16.mxu0 0
        %650 = vmatpush1.bf16.msra.mxu0 0
        %651 = vmatprep.subr.bf16.mxu0 0
        %652 = vmatpush1.bf16.msra.mxu0 0
        %653 = vmatprep.subr.bf16.mxu0 0
        %654 = vmatpush1.bf16.msra.mxu0 0
        %655 = vmatprep.subr.bf16.mxu0 0
        %656 = vmatpush1.bf16.msra.mxu0 0
        %657 = vmatprep.subr.bf16.mxu0 0
        %658 = vmatpush1.bf16.msra.mxu0 0
        %659 = vmatprep.subr.bf16.mxu0 0
        %660 = vmatpush1.bf16.msra.mxu0 0
        %661 = vmatprep.subr.bf16.mxu0 0
        %662 = vmatpush1.bf16.msra.mxu0 0
        %663 = vmatprep.mubr.bf16.mxu0 0
        %664 = vmatmul.mubr.bf16.gmra.mrb[0].mxu0 %v626
        %v665 = vpop.f32.mrb[0].mxu0
        %v666 = vadd.f32 0.0, %v665
        %v667 = vpop.f32.mrb[0].mxu0
        %v668 = vpop.f32.mrb[0].mxu0
        %v669 = vpop.f32.mrb[0].mxu0
        %670 = vdwg.mxu0
        %v671 = vmul.f32 %v666, %v621
        %v672 = vpack.c.bf16 %v671, %v671
        %v674 = vunpack.c.l.b16 %v672
        %v675 = vpack.c.b16 %v674, %v674
        %676 = vrot.lane.b32.xlu0 %v675, 32
        %v677 = vpop.permute.xlu0 %676
        %vm679 = vcmask 388352
        %680 = vst.msk [vmem:[#allocation2] sm:$0xf] %vm679, %v677
        %681 = vrot.lane.b32.xlu0 %v327, 80
        %v682 = vpop.permute.xlu0 %681
        %683 = vrot.lane.b32.xlu0 %v327, 16
        %v684 = vpop.permute.xlu0 %683
        %v686 = vsel %vm332, %v682, 0
        %v689 = vsel %vm332, %v684, 0
        %691 = vmatprep.subr.bf16.mxu0 0
        %692 = vmatpush1.bf16.xpose.msra.mxu0 %v689
        %693 = vmatprep.subr.bf16.mxu0 0
        %694 = vmatpush1.bf16.xpose.msra.mxu0 0
        %695 = vmatprep.subr.bf16.mxu0 0
        %696 = vmatpush1.bf16.xpose.msra.mxu0 0
        %697 = vmatprep.subr.bf16.mxu0 0
        %698 = vmatpush1.bf16.xpose.msra.mxu0 0
        %699 = vmatprep.subr.bf16.mxu0 0
        %700 = vmatpush1.bf16.xpose.msra.mxu0 0
        %701 = vmatprep.subr.bf16.mxu0 0
        %702 = vmatpush1.bf16.xpose.msra.mxu0 0
        %703 = vmatprep.subr.bf16.mxu0 0
        %704 = vmatpush1.bf16.xpose.msra.mxu0 0
        %705 = vmatprep.subr.bf16.mxu0 0
        %706 = vmatpush1.bf16.xpose.msra.mxu0 0
        %707 = vmatprep.subr.bf16.mxu0 0
        %708 = vmatpush1.bf16.xpose.msra.mxu0 0
        %709 = vmatprep.subr.bf16.mxu0 0
        %710 = vmatpush1.bf16.xpose.msra.mxu0 0
        %711 = vmatprep.subr.bf16.mxu0 0
        %712 = vmatpush1.bf16.xpose.msra.mxu0 0
        %713 = vmatprep.subr.bf16.mxu0 0
        %714 = vmatpush1.bf16.xpose.msra.mxu0 0
        %715 = vmatprep.subr.bf16.mxu0 0
        %716 = vmatpush1.bf16.xpose.msra.mxu0 0
        %717 = vmatprep.subr.bf16.mxu0 0
        %718 = vmatpush1.bf16.xpose.msra.mxu0 0
        %719 = vmatprep.subr.bf16.mxu0 0
        %720 = vmatpush1.bf16.xpose.msra.mxu0 0
        %721 = vmatprep.subr.bf16.mxu0 0
        %722 = vmatpush1.bf16.xpose.msra.mxu0 0
        %723 = vmatprep.mubr.bf16.mxu0 0
        %724 = vmatmul.mubr.bf16.gmra.mrb[0].mxu0 %v686
        %v725 = vpop.f32.mrb[0].mxu0
        %v726 = vadd.f32 0.0, %v725
        %v727 = vpop.f32.mrb[0].mxu0
        %v728 = vpop.f32.mrb[0].mxu0
        %v729 = vpop.f32.mrb[0].mxu0
        %730 = vdwg.mxu0
        %v731 = vsel %vm379, %v726, -inf
        %732 = vmax.xlane.f32.xlu0 %v731
        %v733 = vpop.xlane.xlu0 %732
        %v734 = vsub.f32 %v726, %v733
        %v735 = vmul.f32 %v734, 1.442695
        %v736 = vpow.pop %v735
        %v737 = vsel %vm379, %v736, 0.0
        %738 = vadd.xlane.f32.xlu0 %v737
        %v739 = vpop.xlane.xlu0 %738
        %v740 = vrcp.pop %v739
        %v741 = vpack.c.bf16 %v736, %v736
        %742 = vrot.lane.b32.xlu0 %v328, 80
        %v743 = vpop.permute.xlu0 %742
        %v745 = vsel %vm379, %v741, 0
        %v748 = vsel %vm394, %v743, 0
        %750 = vmatprep.subr.bf16.mxu0 0
        %751 = vmatpush1.bf16.msra.mxu0 %v748
        %752 = vmatprep.subr.bf16.mxu0 0
        %753 = vmatpush1.bf16.msra.mxu0 0
        %754 = vmatprep.subr.bf16.mxu0 0
        %755 = vmatpush1.bf16.msra.mxu0 0
        %756 = vmatprep.subr.bf16.mxu0 0
        %757 = vmatpush1.bf16.msra.mxu0 0
        %758 = vmatprep.subr.bf16.mxu0 0
        %759 = vmatpush1.bf16.msra.mxu0 0
        %760 = vmatprep.subr.bf16.mxu0 0
        %761 = vmatpush1.bf16.msra.mxu0 0
        %762 = vmatprep.subr.bf16.mxu0 0
        %763 = vmatpush1.bf16.msra.mxu0 0
        %764 = vmatprep.subr.bf16.mxu0 0
        %765 = vmatpush1.bf16.msra.mxu0 0
        %766 = vmatprep.subr.bf16.mxu0 0
        %767 = vmatpush1.bf16.msra.mxu0 0
        %768 = vmatprep.subr.bf16.mxu0 0
        %769 = vmatpush1.bf16.msra.mxu0 0
        %770 = vmatprep.subr.bf16.mxu0 0
        %771 = vmatpush1.bf16.msra.mxu0 0
        %772 = vmatprep.subr.bf16.mxu0 0
        %773 = vmatpush1.bf16.msra.mxu0 0
        %774 = vmatprep.subr.bf16.mxu0 0
        %775 = vmatpush1.bf16.msra.mxu0 0
        %776 = vmatprep.subr.bf16.mxu0 0
        %777 = vmatpush1.bf16.msra.mxu0 0
        %778 = vmatprep.subr.bf16.mxu0 0
        %779 = vmatpush1.bf16.msra.mxu0 0
        %780 = vmatprep.subr.bf16.mxu0 0
        %781 = vmatpush1.bf16.msra.mxu0 0
        %782 = vmatprep.mubr.bf16.mxu0 0
        %783 = vmatmul.mubr.bf16.gmra.mrb[0].mxu0 %v745
        %v784 = vpop.f32.mrb[0].mxu0
        %v785 = vadd.f32 0.0, %v784
        %v786 = vpop.f32.mrb[0].mxu0
        %v787 = vpop.f32.mrb[0].mxu0
        %v788 = vpop.f32.mrb[0].mxu0
        %789 = vdwg.mxu0
        %v790 = vmul.f32 %v785, %v740
        %v791 = vpack.c.bf16 %v790, %v790
        %v793 = vunpack.c.l.b16 %v791
        %v794 = vpack.c.b16 %v793, %v793
        %795 = vrot.lane.b32.xlu0 %v794, 48
        %v796 = vpop.permute.xlu0 %795
        %vm798 = vcmask 519552
        %799 = vst.msk [vmem:[#allocation2] sm:$0xf] %vm798, %v796
        %v800 = vld [vmem:[#allocation2] sm:$0xf]
        %v801 = vld [vmem:[#allocation8] sm:$0xf]
        %v802 = vld [vmem:[#allocation8 + $0x4] sm:$0xf]
        %v803 = vld [vmem:[#allocation8 + $0x8] sm:$0xf]
        %v804 = vld [vmem:[#allocation8 + $0xc] sm:$0xf]
        %v805 = vld [vmem:[#allocation8 + $0x10] sm:$0xf]
        %v806 = vld [vmem:[#allocation8 + $0x14] sm:$0xf]
        %v807 = vld [vmem:[#allocation8 + $0x18] sm:$0xf]
        %v808 = vld [vmem:[#allocation8 + $0x1c] sm:$0xf]
        %v809 = vld [vmem:[%s3] sm:$0x1]
        %v811 = vlaneseq
        %v812 = vshrl.u32 %v811, 7
        %v813 = vsub.s32 0, %v812
        %v814 = vrot.slane %v809, %v813
        %v824 = vunpack.c.l.b16 %v801
        %v825 = vunpack.c.l.b16 %v802
        %v826 = vunpack.c.l.b16 %v803
        %v827 = vunpack.c.l.b16 %v804
        %v828 = vunpack.c.l.b16 %v805
        %v829 = vunpack.c.l.b16 %v806
        %v830 = vunpack.c.l.b16 %v807
        %v831 = vunpack.c.l.b16 %v808
        %v832 = vpack.c.b16 %v825, %v824
        %v833 = vpack.c.b16 %v827, %v826
        %v834 = vpack.c.b16 %v829, %v828
        %v835 = vpack.c.b16 %v831, %v830
        %vm840 = vcmask 523264
        %v842 = vsel %vm840, %v800, 0
        %844 = vmatprep.subr.bf16.mxu0 0
        %845 = vmatpush1.bf16.msra.mxu0 %v832
        %846 = vmatprep.subr.bf16.mxu0 0
        %847 = vmatpush1.bf16.msra.mxu0 %v833
        %848 = vmatprep.subr.bf16.mxu0 0
        %849 = vmatpush1.bf16.msra.mxu0 %v834
        %850 = vmatprep.subr.bf16.mxu0 0
        %851 = vmatpush1.bf16.msra.mxu0 %v835
        %852 = vmatprep.subr.bf16.mxu0 0
        %853 = vmatpush1.bf16.msra.mxu0 0
        %854 = vmatprep.subr.bf16.mxu0 0
        %855 = vmatpush1.bf16.msra.mxu0 0
        %856 = vmatprep.subr.bf16.mxu0 0
        %857 = vmatpush1.bf16.msra.mxu0 0
        %858 = vmatprep.subr.bf16.mxu0 0
        %859 = vmatpush1.bf16.msra.mxu0 0
        %860 = vmatprep.subr.bf16.mxu0 0
        %861 = vmatpush1.bf16.msra.mxu0 0
        %862 = vmatprep.subr.bf16.mxu0 0
        %863 = vmatpush1.bf16.msra.mxu0 0
        %864 = vmatprep.subr.bf16.mxu0 0
        %865 = vmatpush1.bf16.msra.mxu0 0
        %866 = vmatprep.subr.bf16.mxu0 0
        %867 = vmatpush1.bf16.msra.mxu0 0
        %868 = vmatprep.subr.bf16.mxu0 0
        %869 = vmatpush1.bf16.msra.mxu0 0
        %870 = vmatprep.subr.bf16.mxu0 0
        %871 = vmatpush1.bf16.msra.mxu0 0
        %872 = vmatprep.subr.bf16.mxu0 0
        %873 = vmatpush1.bf16.msra.mxu0 0
        %874 = vmatprep.subr.bf16.mxu0 0
        %875 = vmatpush1.bf16.msra.mxu0 0
        %876 = vmatprep.mubr.bf16.mxu0 0
        %877 = vmatmul.mubr.bf16.gmra.mrb[0].mxu0 %v842
        %v878 = vpop.f32.mrb[0].mxu0
        %v879 = vadd.f32 %v814, %v878
        %v880 = vpop.f32.mrb[0].mxu0
        %v881 = vpop.f32.mrb[0].mxu0
        %v882 = vpop.f32.mrb[0].mxu0
        %883 = vdwg.mxu0
        %884 = vst [vmem:[%s255] sm:$0xff] %v879
        %s885 = sand.u32 %s133, 1
        %s886 = scalar_lea.sflag [#allocation5], %s885
        %s887 = sand.u32 %s133, 1
        %s888 = smul.addr %s887, 8
        %s889 = scalar_lea.vmem [#allocation9], %s888
        // Predicated region
        $region49: #{tpu_custom_call.1} parent=35 // pred_check
          %p890 = pneg %p143
        $region50: #{tpu_custom_call.1} parent=35 // pred_check_branch
          %892 = sbr.rel (%p890) target = $region52
        $region51: #{tpu_custom_call.1} parent=35 // pred_region
          %s894 = ssub.s32 128, 128
          %895 = vsyncadd %s886, %s894
          %s896 = sadd.s32 %s27, %s26
          %s897 = smul.addr %s896, 128
          %s898 = scalar_lea.hbm %s4, %s897
          %s900 = sshll.u32 %s889, 4
          %s901 = int_to_ptr.vmem [resolvable:$true] %s900
          %903 = dma.vmem_to_hbm [thread:$0]  %s901, 128, %s898, %s886
        $region52: #{tpu_custom_call.1} parent=35 // pred_fallthru
          _
      $region36: #{tpu_custom_call.1} parent=5 // pred_fallthru
        _
      %p904 = scmp.le.s32.totalorder 2, %s17
      // Predicated region
      $region53: #{tpu_custom_call.1} parent=5 // pred_check
        %p905 = pneg %p904
      $region54: #{tpu_custom_call.1} parent=5 // pred_check_branch
        %907 = sbr.rel (%p905) target = $region56
      $region55: #{tpu_custom_call.1} parent=5 // pred_region
        %s908 = ssub.s32 %s17, 2
        // Predicated region
        $region57: #{tpu_custom_call.1} parent=55 // pred_check
          %p909 = pneg %p149
        $region58: #{tpu_custom_call.1} parent=55 // pred_check_branch
          %911 = sbr.rel (%p909) target = $region60
        $region59: #{tpu_custom_call.1} parent=55 // pred_region
          %s912 = sand.u32 %s134, 1
          %s913 = scalar_lea.sflag [#allocation5], %s912
          %s914 = sand.u32 %s134, 1
          %s915 = smul.addr %s914, 8
          %s916 = scalar_lea.vmem [#allocation9], %s915
          %917 = dma.done %s913, 128
        $region60: #{tpu_custom_call.1} parent=55 // pred_fallthru
          _
      $region56: #{tpu_custom_call.1} parent=5 // pred_fallthru
        _
    $region6: #{tpu_custom_call.1} parent=1 // loop_footer
      %s21 = sadd.s32 1, %s17
    $region7: #{tpu_custom_call.1} parent=1 // loop_footer_branch
      %16 = sbr.rel target = $region3
    $region8: #{tpu_custom_call.1} parent=1 // loop_exit
      _
    %918 = vsyncpa [#allocation4], 1
    %s919 = scalar_lea.sflag [#allocation4], 1
    %920 = vsyncpa %s919, 1
    %921 = vsyncpa [#allocation7], 1
    %922 = vsyncpa [#allocation5], 1
    %s923 = scalar_lea.sflag [#allocation5], 1
    %924 = vsyncpa %s923, 1

// kernel: tpu_custom_call.1
$region0: #{tpu_custom_call.1}
  #allocation0 [shape = 'u32[]', space=smem, size = 0x4, offset = 0x4, fixed_abs, tag = 'smem constant byte address 0x4 - core index']
  #allocation1 [shape = 'u32[144,128]{1,0:T(1,128)}', space=vmem, size = 0x12000, scoped, tag = 'internal scratch']
  #allocation2 [shape = 'bf16[8,64]{1,0:T(8,128)(2,1)}', space=vmem, size = 0x800, scoped, tag = 'scratch operand']
  %s0 = inlined_call_operand.hbm [shape: bf16[2,8,32], index: 0, kind: input, shape index: {}]
  %s1 = inlined_call_operand.hbm [shape: bf16[32,192], index: 1, kind: input, shape index: {}]
  %s2 = inlined_call_operand.hbm [shape: bf16[64,128], index: 2, kind: input, shape index: {}]
  %s3 = inlined_call_operand.vmem [shape: f32[1,128], index: 3, kind: input, shape index: {}]
  %s4 = inlined_call_operand.hbm [shape: f32[2,8,128], index: 4, kind: output, shape index: {}]
  %s5 = sld [smem:[#allocation0]]
  $region61: #{tpu_custom_call.1} parent=0
    _
  %s7 = ssub.s32 1, %s5
  %s8 = scalar_select 0, %s7, %s5
  $region1: #{tpu_custom_call.1} parent=0
    #allocation3 [shape = 'u8[4096]{0}', space=vmem, size = 0x1000, scoped, tag = 'input window, operand 0']
    #allocation4 [shape = 's32[2]{0}', space=sflag, size = 0x8, scoped, tag = 'scoped memory for tpu_custom_call.1']
    #allocation5 [shape = 's32[2]{0}', space=sflag, size = 0x8, scoped, tag = 'scoped memory for tpu_custom_call.1']
    #allocation6 [shape = 'u8[16384]{0}', space=vmem, size = 0x4000, scoped, tag = 'input window, operand 1, single buffered']
    #allocation7 [shape = 's32[1]{0}', space=sflag, size = 0x4, scoped, tag = 'scoped memory for tpu_custom_call.1']
    #allocation8 [shape = 'u8[16384]{0}', space=vmem, size = 0x4000, scoped, tag = 'input window, operand 2, single buffered']
    #allocation9 [shape = 'u8[8192]{0}', space=vmem, size = 0x2000, scoped, tag = 'output window, operand 0']
    %9 = vsyncpa [#allocation4], 0
    %s10 = scalar_lea.sflag [#allocation4], 1
    %11 = vsyncpa %s10, 0
    %12 = vsyncpa [#allocation7], 0
    %13 = vsyncpa [#allocation5], 0
    %s14 = scalar_lea.sflag [#allocation5], 1
    %15 = vsyncpa %s14, 0
    loop: start=0, step=1, limit=4
    $region2: #{tpu_custom_call.1} parent=1 // loop_pre_header
      _
    $region3: #{tpu_custom_call.1} parent=1 // loop_header
      %s17 = sphi 0, %s21
      %p18 = scmp.ge.s32.totalorder %s17, 4
      %s24 = sphi 0, %s36
      %s25 = sphi 0, %s32
      %s26 = sphi 0, %s24
      %s27 = sphi 0, %s25
      %s28 = sphi 0, %s26
      %s29 = sphi 0, %s27
      %s39 = sphi 0, %s41
      %s42 = sphi 0, %s39
      %s43 = sphi 0, %s42
      %s59 = sphi 0, %s43
      %s63 = sphi 0, %s63
      %s65 = sphi 0, %s63
      %s66 = sphi 0, %s65
      %s80 = sphi 0, %s66
      %s84 = sphi 0, %s84
      %s86 = sphi 0, %s84
      %s87 = sphi 0, %s86
      %s101 = sphi 0, %s87
      %s105 = sphi 0, %s105
      %s107 = sphi 0, %s105
      %s108 = sphi 0, %s107
      %s122 = sphi 0, %s108
      %s130 = sphi 0, %s132
      %s133 = sphi 0, %s130
      %s134 = sphi 0, %s133
      %s150 = sphi 0, %s134
    $region4: #{tpu_custom_call.1} parent=1 // loop_header_branch
      %20 = sbr.rel (%p18) target = $region8
    $region5: #{tpu_custom_call.1} parent=1 // loop_body
      %s22 = ssub.s32 %s17, 1
      %s23 = ssub.s32 %s17, 2
      %s30 = sadd.s32 1, %s25
      %p31 = scmp.ge.s32.totalorder %s30, 1
      %s32 = scalar_select %p31, 0, %s30
      %s33 = sadd.s32 1, %s24
      %s34 = scalar_select %p31, %s33, %s24
      %p35 = scmp.ge.s32.totalorder %s34, 2
      %s36 = scalar_select %p35, 0, %s34
      %s37 = ssub.s32 %s24, %s36
      %p38 = scmp.eq.s32.totalorder %s37, 0
      %s40 = sadd.s32 %s39, 1
      %s41 = scalar_select %p38, %s39, %s40
      %p44 = pneg %p38
      %p45 = scmp.eq.s32.totalorder %s17, 1
      %p46 = por %p44, %p45
      %p47 = scmp.ne.s32.totalorder %s39, %s42
      %p48 = scmp.eq.s32.totalorder %s17, 0
      %p49 = por %p47, %p48
      %p50 = scmp.ne.s32.totalorder %s39, %s42
      %p51 = scmp.eq.s32.totalorder %s22, 1
      %p52 = por %p50, %p51
      %p53 = scmp.ne.s32.totalorder %s42, %s43
      %p54 = scmp.eq.s32.totalorder %s22, 0
      %p55 = por %p53, %p54
      %p56 = scmp.ne.s32.totalorder %s42, %s43
      %p57 = scmp.eq.s32.totalorder %s23, 1
      %p58 = por %p56, %p57
      %p60 = scmp.ne.s32.totalorder %s43, %s59
      %p61 = scmp.eq.s32.totalorder %s23, 0
      %p62 = por %p60, %p61
      %s64 = sadd.s32 %s63, 1
      %p67 = scmp.eq.s32.totalorder %s17, 1
      %p68 = scmp.ne.s32.totalorder %s63, %s65
      %p69 = scmp.eq.s32.totalorder %s17, 0
      %p70 = por %p68, %p69
      %p71 = scmp.ne.s32.totalorder %s63, %s65
      %p72 = scmp.eq.s32.totalorder %s22, 1
      %p73 = por %p71, %p72
      %p74 = scmp.ne.s32.totalorder %s65, %s66
      %p75 = scmp.eq.s32.totalorder %s22, 0
      %p76 = por %p74, %p75
      %p77 = scmp.ne.s32.totalorder %s65, %s66
      %p78 = scmp.eq.s32.totalorder %s23, 1
      %p79 = por %p77, %p78
      %p81 = scmp.ne.s32.totalorder %s66, %s80
      %p82 = scmp.eq.s32.totalorder %s23, 0
      %p83 = por %p81, %p82
      %s85 = sadd.s32 %s84, 1
      %p88 = scmp.eq.s32.totalorder %s17, 1
      %p89 = scmp.ne.s32.totalorder %s84, %s86
      %p90 = scmp.eq.s32.totalorder %s17, 0
      %p91 = por %p89, %p90
      %p92 = scmp.ne.s32.totalorder %s84, %s86
      %p93 = scmp.eq.s32.totalorder %s22, 1
      %p94 = por %p92, %p93
      %p95 = scmp.ne.s32.totalorder %s86, %s87
      %p96 = scmp.eq.s32.totalorder %s22, 0
      %p97 = por %p95, %p96
      %p98 = scmp.ne.s32.totalorder %s86, %s87
      %p99 = scmp.eq.s32.totalorder %s23, 1
      %p100 = por %p98, %p99
      %p102 = scmp.ne.s32.totalorder %s87, %s101
      %p103 = scmp.eq.s32.totalorder %s23, 0
      %p104 = por %p102, %p103
      %s106 = sadd.s32 %s105, 1
      %p109 = scmp.eq.s32.totalorder %s17, 1
      %p110 = scmp.ne.s32.totalorder %s105, %s107
      %p111 = scmp.eq.s32.totalorder %s17, 0
      %p112 = por %p110, %p111
      %p113 = scmp.ne.s32.totalorder %s105, %s107
      %p114 = scmp.eq.s32.totalorder %s22, 1
      %p115 = por %p113, %p114
      %p116 = scmp.ne.s32.totalorder %s107, %s108
      %p117 = scmp.eq.s32.totalorder %s22, 0
      %p118 = por %p116, %p117
      %p119 = scmp.ne.s32.totalorder %s107, %s108
      %p120 = scmp.eq.s32.totalorder %s23, 1
      %p121 = por %p119, %p120
      %p123 = scmp.ne.s32.totalorder %s108, %s122
      %p124 = scmp.eq.s32.totalorder %s23, 0
      %p125 = por %p123, %p124
      %s126 = ssub.s32 %s24, %s36
      %s127 = ssub.s32 %s25, %s32
      %s128 = sor.u32 %s126, %s127
      %p129 = scmp.eq.s32.totalorder %s128, 0
      %s131 = sadd.s32 %s130, 1
      %s132 = scalar_select %p129, %s130, %s131
      %p135 = pneg %p129
      %p136 = scmp.eq.s32.totalorder %s17, 1
      %p137 = por %p135, %p136
      %p138 = scmp.ne.s32.totalorder %s130, %s133
      %p139 = scmp.eq.s32.totalorder %s17, 0
      %p140 = por %p138, %p139
      %p141 = scmp.ne.s32.totalorder %s130, %s133
      %p142 = scmp.eq.s32.totalorder %s22, 1
      %p143 = por %p141, %p142
      %p144 = scmp.ne.s32.totalorder %s133, %s134
      %p145 = scmp.eq.s32.totalorder %s22, 0
      %p146 = por %p144, %p145
      %p147 = scmp.ne.s32.totalorder %s133, %s134
      %p148 = scmp.eq.s32.totalorder %s23, 1
      %p149 = por %p147, %p148
      %p151 = scmp.ne.s32.totalorder %s134, %s150
      %p152 = scmp.eq.s32.totalorder %s23, 0
      %p153 = por %p151, %p152
      %p154 = scmp.le.s32.totalorder 1, %s17
      %p155 = scmp.lt.s32.totalorder %s17, 3
      %p156 = pnand %p154, %p155
      %p157 = pneg %p156
      // Predicated region
      $region9: #{tpu_custom_call.1} parent=5 // pred_check
        _
      $region10: #{tpu_custom_call.1} parent=5 // pred_check_branch
        %159 = sbr.rel (%p156) target = $region12
      $region11: #{tpu_custom_call.1} parent=5 // pred_region
        %s160 = ssub.s32 %s17, 1
        // Predicated region
        $region13: #{tpu_custom_call.1} parent=11 // pred_check
          %p161 = pneg %p76
        $region14: #{tpu_custom_call.1} parent=11 // pred_check_branch
          %163 = sbr.rel (%p161) target = $region16
        $region15: #{tpu_custom_call.1} parent=11 // pred_region
          %s165 = ssub.s32 512, 512
          %166 = vsyncadd [#allocation7], %s165
          %s167 = sshll.u32 [#allocation6], 4
          %s168 = int_to_ptr.vmem [resolvable:$true] %s167
          %173 = dma.hbm_to_vmem [thread:$0]  %s1, 512, %s168, [#allocation7], 128, 128, 8
        $region16: #{tpu_custom_call.1} parent=11 // pred_fallthru
          _
        // Predicated region
        $region17: #{tpu_custom_call.1} parent=11 // pred_check
          %p174 = pneg %p97
        $region18: #{tpu_custom_call.1} parent=11 // pred_check_branch
          %176 = sbr.rel (%p174) target = $region20
        $region19: #{tpu_custom_call.1} parent=11 // pred_region
          %s178 = ssub.s32 512, 512
          %179 = vsyncadd [#allocation7], %s178
          %s180 = sshll.u32 [#allocation8], 4
          %s181 = int_to_ptr.vmem [resolvable:$true] %s180
          %186 = dma.hbm_to_vmem [thread:$0]  %s2, 512, %s181, [#allocation7], 64, 64, 4
        $region20: #{tpu_custom_call.1} parent=11 // pred_fallthru
          _
        // Predicated region
        $region21: #{tpu_custom_call.1} parent=11 // pred_check
          %p187 = pneg %p118
        $region22: #{tpu_custom_call.1} parent=11 // pred_check_branch
          %189 = sbr.rel (%p187) target = $region24
        $region23: #{tpu_custom_call.1} parent=11 // pred_region
          _
        $region24: #{tpu_custom_call.1} parent=11 // pred_fallthru
          _
      $region12: #{tpu_custom_call.1} parent=5 // pred_fallthru
        _
      %p190 = scmp.lt.s32.totalorder %s17, 2
      // Predicated region
      $region25: #{tpu_custom_call.1} parent=5 // pred_check
        %p191 = pneg %p190
      $region26: #{tpu_custom_call.1} parent=5 // pred_check_branch
        %193 = sbr.rel (%p191) target = $region28
      $region27: #{tpu_custom_call.1} parent=5 // pred_region
        // Predicated region
        $region29: #{tpu_custom_call.1} parent=27 // pred_check
          %p194 = pneg %p49
        $region30: #{tpu_custom_call.1} parent=27 // pred_check_branch
          %196 = sbr.rel (%p194) target = $region32
        $region31: #{tpu_custom_call.1} parent=27 // pred_region
          %s197 = sand.u32 %s39, 1
          %s198 = scalar_lea.sflag [#allocation4], %s197
          %s199 = sand.u32 %s39, 1
          %s200 = smul.addr %s199, 4
          %s201 = scalar_lea.vmem [#allocation3], %s200
          %s203 = ssub.s32 64, 64
          %204 = vsyncadd %s198, %s203
          %s205 = smul.addr %s24, 64
          %s206 = scalar_lea.hbm %s0, %s205
          %s208 = sshll.u32 %s201, 4
          %s209 = int_to_ptr.vmem [resolvable:$true] %s208
          %211 = dma.hbm_to_vmem [thread:$0]  %s206, 64, %s209, %s198
        $region32: #{tpu_custom_call.1} parent=27 // pred_fallthru
          _
      $region28: #{tpu_custom_call.1} parent=5 // pred_fallthru
        _
      %p212 = scmp.le.s32.totalorder 1, %s17
      %p213 = scmp.lt.s32.totalorder %s17, 3
      %p214 = pnand %p212, %p213
      %p215 = pneg %p214
      // Predicated region
      $region33: #{tpu_custom_call.1} parent=5 // pred_check
        _
      $region34: #{tpu_custom_call.1} parent=5 // pred_check_branch
        %217 = sbr.rel (%p214) target = $region36
      $region35: #{tpu_custom_call.1} parent=5 // pred_region
        %s218 = ssub.s32 %s17, 1
        %s219 = sand.u32 %s42, 1
        %s220 = scalar_lea.sflag [#allocation4], %s219
        %s221 = sand.u32 %s42, 1
        %s222 = smul.addr %s221, 4
        %s223 = scalar_lea.vmem [#allocation3], %s222
        // Predicated region
        $region37: #{tpu_custom_call.1} parent=35 // pred_check
          %p224 = pneg %p55
        $region38: #{tpu_custom_call.1} parent=35 // pred_check_branch
          %226 = sbr.rel (%p224) target = $region40
        $region39: #{tpu_custom_call.1} parent=35 // pred_region
          %227 = dma.done %s220, 64
        $region40: #{tpu_custom_call.1} parent=35 // pred_fallthru
          _
        // Predicated region
        $region41: #{tpu_custom_call.1} parent=35 // pred_check
          %p228 = pneg %p76
        $region42: #{tpu_custom_call.1} parent=35 // pred_check_branch
          %230 = sbr.rel (%p228) target = $region44
        $region43: #{tpu_custom_call.1} parent=35 // pred_region
          %231 = dma.done [#allocation7], 512
        $region44: #{tpu_custom_call.1} parent=35 // pred_fallthru
          _
        // Predicated region
        $region45: #{tpu_custom_call.1} parent=35 // pred_check
          %p232 = pneg %p97
        $region46: #{tpu_custom_call.1} parent=35 // pred_check_branch
          %234 = sbr.rel (%p232) target = $region48
        $region47: #{tpu_custom_call.1} parent=35 // pred_region
          %235 = dma.done [#allocation7], 512
        $region48: #{tpu_custom_call.1} parent=35 // pred_fallthru
          _
        %s236 = sand.u32 %s42, 1
        %s237 = scalar_lea.sflag [#allocation4], %s236
        %s238 = sand.u32 %s42, 1
        %s239 = smul.addr %s238, 4
        %s240 = scalar_lea.vmem [#allocation3], %s239
        %p241 = pneg %p55
        %p242 = pneg %p52
        %p243 = pneg %p76
        %p244 = pneg %p73
        %p245 = pneg %p97
        %p246 = pneg %p94
        %p247 = pneg %p118
        %p248 = pneg %p115
        %p249 = pneg %p146
        %p250 = pneg %p143
        %s251 = sand.u32 %s133, 1
        %s252 = scalar_lea.sflag [#allocation5], %s251
        %s253 = sand.u32 %s133, 1
        %s254 = smul.addr %s253, 8
        %s255 = scalar_lea.vmem [#allocation9], %s254
        %v257 = vld [vmem:[%s223] sm:$0xf]
        %v258 = vld [vmem:[#allocation6] sm:$0xff]
        %v259 = vld [vmem:[#allocation6 + $0x8] sm:$0xff]
        %v260 = vld [vmem:[#allocation6 + $0x10] sm:$0xff]
        %v261 = vld [vmem:[#allocation6 + $0x18] sm:$0xff]
        %v266 = vunpack.c.l.b16 %v258
        %v267 = vunpack.c.h.b16 %v258
        %v268 = vunpack.c.l.b16 %v259
        %v269 = vunpack.c.h.b16 %v259
        %v270 = vunpack.c.l.b16 %v260
        %v271 = vunpack.c.h.b16 %v260
        %v272 = vunpack.c.l.b16 %v261
        %v273 = vunpack.c.h.b16 %v261
        %v274 = vpack.c.b16 %v268, %v266
        %v275 = vpack.c.b16 %v269, %v267
        %v276 = vpack.c.b16 %v272, %v270
        %v277 = vpack.c.b16 %v273, %v271
        %vm282 = vcmask 261120
        %v284 = vsel %vm282, %v257, 0
        %286 = vmatprep.subr.bf16.mxu0 %v275
        %287 = vmatpush1.bf16.msra.mxu0 %v274
        %288 = vmatprep.subr.bf16.mxu0 %v277
        %289 = vmatpush1.bf16.msra.mxu0 %v276
        %290 = vmatprep.subr.bf16.mxu0 0
        %291 = vmatpush1.bf16.msra.mxu0 0
        %292 = vmatprep.subr.bf16.mxu0 0
        %293 = vmatpush1.bf16.msra.mxu0 0
        %294 = vmatprep.subr.bf16.mxu0 0
        %295 = vmatpush1.bf16.msra.mxu0 0
        %296 = vmatprep.subr.bf16.mxu0 0
        %297 = vmatpush1.bf16.msra.mxu0 0
        %298 = vmatprep.subr.bf16.mxu0 0
        %299 = vmatpush1.bf16.msra.mxu0 0
        %300 = vmatprep.subr.bf16.mxu0 0
        %301 = vmatpush1.bf16.msra.mxu0 0
        %302 = vmatprep.subr.bf16.mxu0 0
        %303 = vmatpush1.bf16.msra.mxu0 0
        %304 = vmatprep.subr.bf16.mxu0 0
        %305 = vmatpush1.bf16.msra.mxu0 0
        %306 = vmatprep.subr.bf16.mxu0 0
        %307 = vmatpush1.bf16.msra.mxu0 0
        %308 = vmatprep.subr.bf16.mxu0 0
        %309 = vmatpush1.bf16.msra.mxu0 0
        %310 = vmatprep.subr.bf16.mxu0 0
        %311 = vmatpush1.bf16.msra.mxu0 0
        %312 = vmatprep.subr.bf16.mxu0 0
        %313 = vmatpush1.bf16.msra.mxu0 0
        %314 = vmatprep.subr.bf16.mxu0 0
        %315 = vmatpush1.bf16.msra.mxu0 0
        %316 = vmatprep.subr.bf16.mxu0 0
        %317 = vmatpush1.bf16.msra.mxu0 0
        %318 = vmatprep.mubr.bf16.mxu0 0
        %319 = vmatmul.mubr.bf16.gmra.mrb[0].mxu0 %v284
        %v320 = vpop.f32.mrb[0].mxu0
        %v321 = vadd.f32 0.0, %v320
        %v322 = vpop.f32.mrb[0].mxu0
        %v323 = vadd.f32 0.0, %v322
        %v324 = vpop.f32.mrb[0].mxu0
        %v325 = vpop.f32.mrb[0].mxu0
        %326 = vdwg.mxu0
        %v327 = vpack.c.bf16 %v321, %v321
        %v328 = vpack.c.bf16 %v323, %v323
        %330 = vrot.lane.b32.xlu0 %v327, 64
        %v331 = vpop.permute.xlu0 %330
        %vm332 = vcmask 130048
        %v334 = vsel %vm332, %v327, 0
        %v337 = vsel %vm332, %v331, 0
        %339 = vmatprep.subr.bf16.mxu0 0
        %340 = vmatpush1.bf16.xpose.msra.mxu0 %v337
        %341 = vmatprep.subr.bf16.mxu0 0
        %342 = vmatpush1.bf16.xpose.msra.mxu0 0
        %343 = vmatprep.subr.bf16.mxu0 0
        %344 = vmatpush1.bf16.xpose.msra.mxu0 0
        %345 = vmatprep.subr.bf16.mxu0 0
        %346 = vmatpush1.bf16.xpose.msra.mxu0 0
        %347 = vmatprep.subr.bf16.mxu0 0
        %348 = vmatpush1.bf16.xpose.msra.mxu0 0
        %349 = vmatprep.subr.bf16.mxu0 0
        %350 = vmatpush1.bf16.xpose.msra.mxu0 0
        %351 = vmatprep.subr.bf16.mxu0 0
        %352 = vmatpush1.bf16.xpose.msra.mxu0 0
        %353 = vmatprep.subr.bf16.mxu0 0
        %354 = vmatpush1.bf16.xpose.msra.mxu0 0
        %355 = vmatprep.subr.bf16.mxu0 0
        %356 = vmatpush1.bf16.xpose.msra.mxu0 0
        %357 = vmatprep.subr.bf16.mxu0 0
        %358 = vmatpush1.bf16.xpose.msra.mxu0 0
        %359 = vmatprep.subr.bf16.mxu0 0
        %360 = vmatpush1.bf16.xpose.msra.mxu0 0
        %361 = vmatprep.subr.bf16.mxu0 0
        %362 = vmatpush1.bf16.xpose.msra.mxu0 0
        %363 = vmatprep.subr.bf16.mxu0 0
        %364 = vmatpush1.bf16.xpose.msra.mxu0 0
        %365 = vmatprep.subr.bf16.mxu0 0
        %366 = vmatpush1.bf16.xpose.msra.mxu0 0
        %367 = vmatprep.subr.bf16.mxu0 0
        %368 = vmatpush1.bf16.xpose.msra.mxu0 0
        %369 = vmatprep.subr.bf16.mxu0 0
        %370 = vmatpush1.bf16.xpose.msra.mxu0 0
        %371 = vmatprep.mubr.bf16.mxu0 0
        %372 = vmatmul.mubr.bf16.gmra.mrb[0].mxu0 %v334
        %v373 = vpop.f32.mrb[0].mxu0
        %v374 = vadd.f32 0.0, %v373
        %v375 = vpop.f32.mrb[0].mxu0
        %v376 = vpop.f32.mrb[0].mxu0
        %v377 = vpop.f32.mrb[0].mxu0
        %378 = vdwg.mxu0
        %vm379 = vcmask 64512
        %v380 = vsel %vm379, %v374, -inf
        %381 = vmax.xlane.f32.xlu0 %v380
        %v382 = vpop.xlane.xlu0 %381
        %v383 = vsub.f32 %v374, %v382
        %v384 = vmul.f32 %v383, 1.442695
        %v385 = vpow.pop %v384
        %v386 = vsel %vm379, %v385, 0.0
        %387 = vadd.xlane.f32.xlu0 %v386
        %v388 = vpop.xlane.xlu0 %387
        %v389 = vrcp.pop %v388
        %v390 = vpack.c.bf16 %v385, %v385
        %v392 = vsel %vm379, %v390, 0
        %vm394 = vcmask 1043456
        %v396 = vsel %vm394, %v328, 0
        %398 = vmatprep.subr.bf16.mxu0 0
        %399 = vmatpush1.bf16.msra.mxu0 %v396
        %400 = vmatprep.subr.bf16.mxu0 0
        %401 = vmatpush1.bf16.msra.mxu0 0
        %402 = vmatprep.subr.bf16.mxu0 0
        %403 = vmatpush1.bf16.msra.mxu0 0
        %404 = vmatprep.subr.bf16.mxu0 0
        %405 = vmatpush1.bf16.msra.mxu0 0
        %406 = vmatprep.subr.bf16.mxu0 0
        %407 = vmatpush1.bf16.msra.mxu0 0
        %408 = vmatprep.subr.bf16.mxu0 0
        %409 = vmatpush1.bf16.msra.mxu0 0
        %410 = vmatprep.subr.bf16.mxu0 0
        %411 = vmatpush1.bf16.msra.mxu0 0
        %412 = vmatprep.subr.bf16.mxu0 0
        %413 = vmatpush1.bf16.msra.mxu0 0
        %414 = vmatprep.subr.bf16.mxu0 0
        %415 = vmatpush1.bf16.msra.mxu0 0
        %416 = vmatprep.subr.bf16.mxu0 0
        %417 = vmatpush1.bf16.msra.mxu0 0
        %418 = vmatprep.subr.bf16.mxu0 0
        %419 = vmatpush1.bf16.msra.mxu0 0
        %420 = vmatprep.subr.bf16.mxu0 0
        %421 = vmatpush1.bf16.msra.mxu0 0
        %422 = vmatprep.subr.bf16.mxu0 0
        %423 = vmatpush1.bf16.msra.mxu0 0
        %424 = vmatprep.subr.bf16.mxu0 0
        %425 = vmatpush1.bf16.msra.mxu0 0
        %426 = vmatprep.subr.bf16.mxu0 0
        %427 = vmatpush1.bf16.msra.mxu0 0
        %428 = vmatprep.subr.bf16.mxu0 0
        %429 = vmatpush1.bf16.msra.mxu0 0
        %430 = vmatprep.mubr.bf16.mxu0 0
        %431 = vmatmul.mubr.bf16.gmra.mrb[0].mxu0 %v392
        %v432 = vpop.f32.mrb[0].mxu0
        %v433 = vadd.f32 0.0, %v432
        %v434 = vpop.f32.mrb[0].mxu0
        %v435 = vpop.f32.mrb[0].mxu0
        %v436 = vpop.f32.mrb[0].mxu0
        %437 = vdwg.mxu0
        %v438 = vmul.f32 %v433, %v389
        %v439 = vpack.c.bf16 %v438, %v438
        %vm440 = vcmask 125952
        %441 = vst.msk [vmem:[#allocation2] sm:$0xf] %vm440, %v439
        %442 = vrot.lane.b32.xlu0 %v327, 112
        %v443 = vpop.permute.xlu0 %442
        %444 = vrot.lane.b32.xlu0 %v327, 48
        %v445 = vpop.permute.xlu0 %444
        %v447 = vsel %vm332, %v443, 0
        %v450 = vsel %vm332, %v445, 0
        %452 = vmatprep.subr.bf16.mxu0 0
        %453 = vmatpush1.bf16.xpose.msra.mxu0 %v450
        %454 = vmatprep.subr.bf16.mxu0 0
        %455 = vmatpush1.bf16.xpose.msra.mxu0 0
        %456 = vmatprep.subr.bf16.mxu0 0
        %457 = vmatpush1.bf16.xpose.msra.mxu0 0
        %458 = vmatprep.subr.bf16.mxu0 0
        %459 = vmatpush1.bf16.xpose.msra.mxu0 0
        %460 = vmatprep.subr.bf16.mxu0 0
        %461 = vmatpush1.bf16.xpose.msra.mxu0 0
        %462 = vmatprep.subr.bf16.mxu0 0
        %463 = vmatpush1.bf16.xpose.msra.mxu0 0
        %464 = vmatprep.subr.bf16.mxu0 0
        %465 = vmatpush1.bf16.xpose.msra.mxu0 0
        %466 = vmatprep.subr.bf16.mxu0 0
        %467 = vmatpush1.bf16.xpose.msra.mxu0 0
        %468 = vmatprep.subr.bf16.mxu0 0
        %469 = vmatpush1.bf16.xpose.msra.mxu0 0
        %470 = vmatprep.subr.bf16.mxu0 0
        %471 = vmatpush1.bf16.xpose.msra.mxu0 0
        %472 = vmatprep.subr.bf16.mxu0 0
        %473 = vmatpush1.bf16.xpose.msra.mxu0 0
        %474 = vmatprep.subr.bf16.mxu0 0
        %475 = vmatpush1.bf16.xpose.msra.mxu0 0
        %476 = vmatprep.subr.bf16.mxu0 0
        %477 = vmatpush1.bf16.xpose.msra.mxu0 0
        %478 = vmatprep.subr.bf16.mxu0 0
        %479 = vmatpush1.bf16.xpose.msra.mxu0 0
        %480 = vmatprep.subr.bf16.mxu0 0
        %481 = vmatpush1.bf16.xpose.msra.mxu0 0
        %482 = vmatprep.subr.bf16.mxu0 0
        %483 = vmatpush1.bf16.xpose.msra.mxu0 0
        %484 = vmatprep.mubr.bf16.mxu0 0
        %485 = vmatmul.mubr.bf16.gmra.mrb[0].mxu0 %v447
        %v486 = vpop.f32.mrb[0].mxu0
        %v487 = vadd.f32 0.0, %v486
        %v488 = vpop.f32.mrb[0].mxu0
        %v489 = vpop.f32.mrb[0].mxu0
        %v490 = vpop.f32.mrb[0].mxu0
        %491 = vdwg.mxu0
        %v492 = vsel %vm379, %v487, -inf
        %493 = vmax.xlane.f32.xlu0 %v492
        %v494 = vpop.xlane.xlu0 %493
        %v495 = vsub.f32 %v487, %v494
        %v496 = vmul.f32 %v495, 1.442695
        %v497 = vpow.pop %v496
        %v498 = vsel %vm379, %v497, 0.0
        %499 = vadd.xlane.f32.xlu0 %v498
        %v500 = vpop.xlane.xlu0 %499
        %v501 = vrcp.pop %v500
        %v502 = vpack.c.bf16 %v497, %v497
        %504 = vrot.lane.b32.xlu0 %v328, 112
        %v505 = vpop.permute.xlu0 %504
        %v507 = vsel %vm379, %v502, 0
        %v510 = vsel %vm394, %v505, 0
        %512 = vmatprep.subr.bf16.mxu0 0
        %513 = vmatpush1.bf16.msra.mxu0 %v510
        %514 = vmatprep.subr.bf16.mxu0 0
        %515 = vmatpush1.bf16.msra.mxu0 0
        %516 = vmatprep.subr.bf16.mxu0 0
        %517 = vmatpush1.bf16.msra.mxu0 0
        %518 = vmatprep.subr.bf16.mxu0 0
        %519 = vmatpush1.bf16.msra.mxu0 0
        %520 = vmatprep.subr.bf16.mxu0 0
        %521 = vmatpush1.bf16.msra.mxu0 0
        %522 = vmatprep.subr.bf16.mxu0 0
        %523 = vmatpush1.bf16.msra.mxu0 0
        %524 = vmatprep.subr.bf16.mxu0 0
        %525 = vmatpush1.bf16.msra.mxu0 0
        %526 = vmatprep.subr.bf16.mxu0 0
        %527 = vmatpush1.bf16.msra.mxu0 0
        %528 = vmatprep.subr.bf16.mxu0 0
        %529 = vmatpush1.bf16.msra.mxu0 0
        %530 = vmatprep.subr.bf16.mxu0 0
        %531 = vmatpush1.bf16.msra.mxu0 0
        %532 = vmatprep.subr.bf16.mxu0 0
        %533 = vmatpush1.bf16.msra.mxu0 0
        %534 = vmatprep.subr.bf16.mxu0 0
        %535 = vmatpush1.bf16.msra.mxu0 0
        %536 = vmatprep.subr.bf16.mxu0 0
        %537 = vmatpush1.bf16.msra.mxu0 0
        %538 = vmatprep.subr.bf16.mxu0 0
        %539 = vmatpush1.bf16.msra.mxu0 0
        %540 = vmatprep.subr.bf16.mxu0 0
        %541 = vmatpush1.bf16.msra.mxu0 0
        %542 = vmatprep.subr.bf16.mxu0 0
        %543 = vmatpush1.bf16.msra.mxu0 0
        %544 = vmatprep.mubr.bf16.mxu0 0
        %545 = vmatmul.mubr.bf16.gmra.mrb[0].mxu0 %v507
        %v546 = vpop.f32.mrb[0].mxu0
        %v547 = vadd.f32 0.0, %v546
        %v548 = vpop.f32.mrb[0].mxu0
        %v549 = vpop.f32.mrb[0].mxu0
        %v550 = vpop.f32.mrb[0].mxu0
        %551 = vdwg.mxu0
        %v552 = vmul.f32 %v547, %v501
        %v553 = vpack.c.bf16 %v552, %v552
        %v555 = vunpack.c.l.b16 %v553
        %v556 = vpack.c.b16 %v555, %v555
        %557 = vrot.lane.b32.xlu0 %v556, 16
        %v558 = vpop.permute.xlu0 %557
        %vm560 = vcmask 257152
        %561 = vst.msk [vmem:[#allocation2] sm:$0xf] %vm560, %v558
        %562 = vrot.lane.b32.xlu0 %v327, 96
        %v563 = vpop.permute.xlu0 %562
        %564 = vrot.lane.b32.xlu0 %v327, 32
        %v565 = vpop.permute.xlu0 %564
        %v567 = vsel %vm332, %v563, 0
        %v570 = vsel %vm332, %v565, 0
        %572 = vmatprep.subr.bf16.mxu0 0
        %573 = vmatpush1.bf16.xpose.msra.mxu0 %v570
        %574 = vmatprep.subr.bf16.mxu0 0
        %575 = vmatpush1.bf16.xpose.msra.mxu0 0
        %576 = vmatprep.subr.bf16.mxu0 0
        %577 = vmatpush1.bf16.xpose.msra.mxu0 0
        %578 = vmatprep.subr.bf16.mxu0 0
        %579 = vmatpush1.bf16.xpose.msra.mxu0 0
        %580 = vmatprep.subr.bf16.mxu0 0
        %581 = vmatpush1.bf16.xpose.msra.mxu0 0
        %582 = vmatprep.subr.bf16.mxu0 0
        %583 = vmatpush1.bf16.xpose.msra.mxu0 0
        %584 = vmatprep.subr.bf16.mxu0 0
        %585 = vmatpush1.bf16.xpose.msra.mxu0 0
        %586 = vmatprep.subr.bf16.mxu0 0
        %587 = vmatpush1.bf16.xpose.msra.mxu0 0
        %588 = vmatprep.subr.bf16.mxu0 0
        %589 = vmatpush1.bf16.xpose.msra.mxu0 0
        %590 = vmatprep.subr.bf16.mxu0 0
        %591 = vmatpush1.bf16.xpose.msra.mxu0 0
        %592 = vmatprep.subr.bf16.mxu0 0
        %593 = vmatpush1.bf16.xpose.msra.mxu0 0
        %594 = vmatprep.subr.bf16.mxu0 0
        %595 = vmatpush1.bf16.xpose.msra.mxu0 0
        %596 = vmatprep.subr.bf16.mxu0 0
        %597 = vmatpush1.bf16.xpose.msra.mxu0 0
        %598 = vmatprep.subr.bf16.mxu0 0
        %599 = vmatpush1.bf16.xpose.msra.mxu0 0
        %600 = vmatprep.subr.bf16.mxu0 0
        %601 = vmatpush1.bf16.xpose.msra.mxu0 0
        %602 = vmatprep.subr.bf16.mxu0 0
        %603 = vmatpush1.bf16.xpose.msra.mxu0 0
        %604 = vmatprep.mubr.bf16.mxu0 0
        %605 = vmatmul.mubr.bf16.gmra.mrb[0].mxu0 %v567
        %v606 = vpop.f32.mrb[0].mxu0
        %v607 = vadd.f32 0.0, %v606
        %v608 = vpop.f32.mrb[0].mxu0
        %v609 = vpop.f32.mrb[0].mxu0
        %v610 = vpop.f32.mrb[0].mxu0
        %611 = vdwg.mxu0
        %v612 = vsel %vm379, %v607, -inf
        %613 = vmax.xlane.f32.xlu0 %v612
        %v614 = vpop.xlane.xlu0 %613
        %v615 = vsub.f32 %v607, %v614
        %v616 = vmul.f32 %v615, 1.442695
        %v617 = vpow.pop %v616
        %v618 = vsel %vm379, %v617, 0.0
        %619 = vadd.xlane.f32.xlu0 %v618
        %v620 = vpop.xlane.xlu0 %619
        %v621 = vrcp.pop %v620
        %v622 = vpack.c.bf16 %v617, %v617
        %623 = vrot.lane.b32.xlu0 %v328, 96
        %v624 = vpop.permute.xlu0 %623
        %v626 = vsel %vm379, %v622, 0
        %v629 = vsel %vm394, %v624, 0
        %631 = vmatprep.subr.bf16.mxu0 0
        %632 = vmatpush1.bf16.msra.mxu0 %v629
        %633 = vmatprep.subr.bf16.mxu0 0
        %634 = vmatpush1.bf16.msra.mxu0 0
        %635 = vmatprep.subr.bf16.mxu0 0
        %636 = vmatpush1.bf16.msra.mxu0 0
        %637 = vmatprep.subr.bf16.mxu0 0
        %638 = vmatpush1.bf16.msra.mxu0 0
        %639 = vmatprep.subr.bf16.mxu0 0
        %640 = vmatpush1.bf16.msra.mxu0 0
        %641 = vmatprep.subr.bf16.mxu0 0
        %642 = vmatpush1.bf16.msra.mxu0 0
        %643 = vmatprep.subr.bf16.mxu0 0
        %644 = vmatpush1.bf16.msra.mxu0 0
        %645 = vmatprep.subr.bf16.mxu0 0
        %646 = vmatpush1.bf16.msra.mxu0 0
        %647 = vmatprep.subr.bf16.mxu0 0
        %648 = vmatpush1.bf16.msra.mxu0 0
        %649 = vmatprep.subr.bf16.mxu0 0
        %650 = vmatpush1.bf16.msra.mxu0 0
        %651 = vmatprep.subr.bf16.mxu0 0
        %652 = vmatpush1.bf16.msra.mxu0 0
        %653 = vmatprep.subr.bf16.mxu0 0
        %654 = vmatpush1.bf16.msra.mxu0 0
        %655 = vmatprep.subr.bf16.mxu0 0
        %656 = vmatpush1.bf16.msra.mxu0 0
        %657 = vmatprep.subr.bf16.mxu0 0
        %658 = vmatpush1.bf16.msra.mxu0 0
        %659 = vmatprep.subr.bf16.mxu0 0
        %660 = vmatpush1.bf16.msra.mxu0 0
        %661 = vmatprep.subr.bf16.mxu0 0
        %662 = vmatpush1.bf16.msra.mxu0 0
        %663 = vmatprep.mubr.bf16.mxu0 0
        %664 = vmatmul.mubr.bf16.gmra.mrb[0].mxu0 %v626
        %v665 = vpop.f32.mrb[0].mxu0
        %v666 = vadd.f32 0.0, %v665
        %v667 = vpop.f32.mrb[0].mxu0
        %v668 = vpop.f32.mrb[0].mxu0
        %v669 = vpop.f32.mrb[0].mxu0
        %670 = vdwg.mxu0
        %v671 = vmul.f32 %v666, %v621
        %v672 = vpack.c.bf16 %v671, %v671
        %v674 = vunpack.c.l.b16 %v672
        %v675 = vpack.c.b16 %v674, %v674
        %676 = vrot.lane.b32.xlu0 %v675, 32
        %v677 = vpop.permute.xlu0 %676
        %vm679 = vcmask 388352
        %680 = vst.msk [vmem:[#allocation2] sm:$0xf] %vm679, %v677
        %681 = vrot.lane.b32.xlu0 %v327, 80
        %v682 = vpop.permute.xlu0 %681
        %683 = vrot.lane.b32.xlu0 %v327, 16
        %v684 = vpop.permute.xlu0 %683
        %v686 = vsel %vm332, %v682, 0
        %v689 = vsel %vm332, %v684, 0
        %691 = vmatprep.subr.bf16.mxu0 0
        %692 = vmatpush1.bf16.xpose.msra.mxu0 %v689
        %693 = vmatprep.subr.bf16.mxu0 0
        %694 = vmatpush1.bf16.xpose.msra.mxu0 0
        %695 = vmatprep.subr.bf16.mxu0 0
        %696 = vmatpush1.bf16.xpose.msra.mxu0 0
        %697 = vmatprep.subr.bf16.mxu0 0
        %698 = vmatpush1.bf16.xpose.msra.mxu0 0
        %699 = vmatprep.subr.bf16.mxu0 0
        %700 = vmatpush1.bf16.xpose.msra.mxu0 0
        %701 = vmatprep.subr.bf16.mxu0 0
        %702 = vmatpush1.bf16.xpose.msra.mxu0 0
        %703 = vmatprep.subr.bf16.mxu0 0
        %704 = vmatpush1.bf16.xpose.msra.mxu0 0
        %705 = vmatprep.subr.bf16.mxu0 0
        %706 = vmatpush1.bf16.xpose.msra.mxu0 0
        %707 = vmatprep.subr.bf16.mxu0 0
        %708 = vmatpush1.bf16.xpose.msra.mxu0 0
        %709 = vmatprep.subr.bf16.mxu0 0
        %710 = vmatpush1.bf16.xpose.msra.mxu0 0
        %711 = vmatprep.subr.bf16.mxu0 0
        %712 = vmatpush1.bf16.xpose.msra.mxu0 0
        %713 = vmatprep.subr.bf16.mxu0 0
        %714 = vmatpush1.bf16.xpose.msra.mxu0 0
        %715 = vmatprep.subr.bf16.mxu0 0
        %716 = vmatpush1.bf16.xpose.msra.mxu0 0
        %717 = vmatprep.subr.bf16.mxu0 0
        %718 = vmatpush1.bf16.xpose.msra.mxu0 0
        %719 = vmatprep.subr.bf16.mxu0 0
        %720 = vmatpush1.bf16.xpose.msra.mxu0 0
        %721 = vmatprep.subr.bf16.mxu0 0
        %722 = vmatpush1.bf16.xpose.msra.mxu0 0
        %723 = vmatprep.mubr.bf16.mxu0 0
        %724 = vmatmul.mubr.bf16.gmra.mrb[0].mxu0 %v686
        %v725 = vpop.f32.mrb[0].mxu0
        %v726 = vadd.f32 0.0, %v725
        %v727 = vpop.f32.mrb[0].mxu0
        %v728 = vpop.f32.mrb[0].mxu0
        %v729 = vpop.f32.mrb[0].mxu0
        %730 = vdwg.mxu0
        %v731 = vsel %vm379, %v726, -inf
        %732 = vmax.xlane.f32.xlu0 %v731
        %v733 = vpop.xlane.xlu0 %732
        %v734 = vsub.f32 %v726, %v733
        %v735 = vmul.f32 %v734, 1.442695
        %v736 = vpow.pop %v735
        %v737 = vsel %vm379, %v736, 0.0
        %738 = vadd.xlane.f32.xlu0 %v737
        %v739 = vpop.xlane.xlu0 %738
        %v740 = vrcp.pop %v739
        %v741 = vpack.c.bf16 %v736, %v736
        %742 = vrot.lane.b32.xlu0 %v328, 80
        %v743 = vpop.permute.xlu0 %742
        %v745 = vsel %vm379, %v741, 0
        %v748 = vsel %vm394, %v743, 0
        %750 = vmatprep.subr.bf16.mxu0 0
        %751 = vmatpush1.bf16.msra.mxu0 %v748
        %752 = vmatprep.subr.bf16.mxu0 0
        %753 = vmatpush1.bf16.msra.mxu0 0
        %754 = vmatprep.subr.bf16.mxu0 0
        %755 = vmatpush1.bf16.msra.mxu0 0
        %756 = vmatprep.subr.bf16.mxu0 0
        %757 = vmatpush1.bf16.msra.mxu0 0
        %758 = vmatprep.subr.bf16.mxu0 0
        %759 = vmatpush1.bf16.msra.mxu0 0
        %760 = vmatprep.subr.bf16.mxu0 0
        %761 = vmatpush1.bf16.msra.mxu0 0
        %762 = vmatprep.subr.bf16.mxu0 0
        %763 = vmatpush1.bf16.msra.mxu0 0
        %764 = vmatprep.subr.bf16.mxu0 0
        %765 = vmatpush1.bf16.msra.mxu0 0
        %766 = vmatprep.subr.bf16.mxu0 0
        %767 = vmatpush1.bf16.msra.mxu0 0
        %768 = vmatprep.subr.bf16.mxu0 0
        %769 = vmatpush1.bf16.msra.mxu0 0
        %770 = vmatprep.subr.bf16.mxu0 0
        %771 = vmatpush1.bf16.msra.mxu0 0
        %772 = vmatprep.subr.bf16.mxu0 0
        %773 = vmatpush1.bf16.msra.mxu0 0
        %774 = vmatprep.subr.bf16.mxu0 0
        %775 = vmatpush1.bf16.msra.mxu0 0
        %776 = vmatprep.subr.bf16.mxu0 0
        %777 = vmatpush1.bf16.msra.mxu0 0
        %778 = vmatprep.subr.bf16.mxu0 0
        %779 = vmatpush1.bf16.msra.mxu0 0
        %780 = vmatprep.subr.bf16.mxu0 0
        %781 = vmatpush1.bf16.msra.mxu0 0
        %782 = vmatprep.mubr.bf16.mxu0 0
        %783 = vmatmul.mubr.bf16.gmra.mrb[0].mxu0 %v745
        %v784 = vpop.f32.mrb[0].mxu0
        %v785 = vadd.f32 0.0, %v784
        %v786 = vpop.f32.mrb[0].mxu0
        %v787 = vpop.f32.mrb[0].mxu0
        %v788 = vpop.f32.mrb[0].mxu0
        %789 = vdwg.mxu0
        %v790 = vmul.f32 %v785, %v740
        %v791 = vpack.c.bf16 %v790, %v790
        %v793 = vunpack.c.l.b16 %v791
        %v794 = vpack.c.b16 %v793, %v793
        %795 = vrot.lane.b32.xlu0 %v794, 48
        %v796 = vpop.permute.xlu0 %795
        %vm798 = vcmask 519552
        %799 = vst.msk [vmem:[#allocation2] sm:$0xf] %vm798, %v796
        %v800 = vld [vmem:[#allocation2] sm:$0xf]
        %v801 = vld [vmem:[#allocation8] sm:$0xf]
        %v802 = vld [vmem:[#allocation8 + $0x4] sm:$0xf]
        %v803 = vld [vmem:[#allocation8 + $0x8] sm:$0xf]
        %v804 = vld [vmem:[#allocation8 + $0xc] sm:$0xf]
        %v805 = vld [vmem:[#allocation8 + $0x10] sm:$0xf]
        %v806 = vld [vmem:[#allocation8 + $0x14] sm:$0xf]
        %v807 = vld [vmem:[#allocation8 + $0x18] sm:$0xf]
        %v808 = vld [vmem:[#allocation8 + $0x1c] sm:$0xf]
        %v809 = vld [vmem:[%s3] sm:$0x1]
        %v811 = vlaneseq
        %v812 = vshrl.u32 %v811, 7
        %v813 = vsub.s32 0, %v812
        %v814 = vrot.slane %v809, %v813
        %v824 = vunpack.c.l.b16 %v801
        %v825 = vunpack.c.l.b16 %v802
        %v826 = vunpack.c.l.b16 %v803
        %v827 = vunpack.c.l.b16 %v804
        %v828 = vunpack.c.l.b16 %v805
        %v829 = vunpack.c.l.b16 %v806
        %v830 = vunpack.c.l.b16 %v807
        %v831 = vunpack.c.l.b16 %v808
        %v832 = vpack.c.b16 %v825, %v824
        %v833 = vpack.c.b16 %v827, %v826
        %v834 = vpack.c.b16 %v829, %v828
        %v835 = vpack.c.b16 %v831, %v830
        %vm840 = vcmask 523264
        %v842 = vsel %vm840, %v800, 0
        %844 = vmatprep.subr.bf16.mxu0 0
        %845 = vmatpush1.bf16.msra.mxu0 %v832
        %846 = vmatprep.subr.bf16.mxu0 0
        %847 = vmatpush1.bf16.msra.mxu0 %v833
        %848 = vmatprep.subr.bf16.mxu0 0
        %849 = vmatpush1.bf16.msra.mxu0 %v834
        %850 = vmatprep.subr.bf16.mxu0 0
        %851 = vmatpush1.bf16.msra.mxu0 %v835
        %852 = vmatprep.subr.bf16.mxu0 0
        %853 = vmatpush1.bf16.msra.mxu0 0
        %854 = vmatprep.subr.bf16.mxu0 0
        %855 = vmatpush1.bf16.msra.mxu0 0
        %856 = vmatprep.subr.bf16.mxu0 0
        %857 = vmatpush1.bf16.msra.mxu0 0
        %858 = vmatprep.subr.bf16.mxu0 0
        %859 = vmatpush1.bf16.msra.mxu0 0
        %860 = vmatprep.subr.bf16.mxu0 0
        %861 = vmatpush1.bf16.msra.mxu0 0
        %862 = vmatprep.subr.bf16.mxu0 0
        %863 = vmatpush1.bf16.msra.mxu0 0
        %864 = vmatprep.subr.bf16.mxu0 0
        %865 = vmatpush1.bf16.msra.mxu0 0
        %866 = vmatprep.subr.bf16.mxu0 0
        %867 = vmatpush1.bf16.msra.mxu0 0
        %868 = vmatprep.subr.bf16.mxu0 0
        %869 = vmatpush1.bf16.msra.mxu0 0
        %870 = vmatprep.subr.bf16.mxu0 0
        %871 = vmatpush1.bf16.msra.mxu0 0
        %872 = vmatprep.subr.bf16.mxu0 0
        %873 = vmatpush1.bf16.msra.mxu0 0
        %874 = vmatprep.subr.bf16.mxu0 0
        %875 = vmatpush1.bf16.msra.mxu0 0
        %876 = vmatprep.mubr.bf16.mxu0 0
        %877 = vmatmul.mubr.bf16.gmra.mrb[0].mxu0 %v842
        %v878 = vpop.f32.mrb[0].mxu0
        %v879 = vadd.f32 %v814, %v878
        %v880 = vpop.f32.mrb[0].mxu0
        %v881 = vpop.f32.mrb[0].mxu0
        %v882 = vpop.f32.mrb[0].mxu0
        %883 = vdwg.mxu0
        %884 = vst [vmem:[%s255] sm:$0xff] %v879
        %s885 = sand.u32 %s133, 1
        %s886 = scalar_lea.sflag [#allocation5], %s885
        %s887 = sand.u32 %s133, 1
        %s888 = smul.addr %s887, 8
        %s889 = scalar_lea.vmem [#allocation9], %s888
        // Predicated region
        $region49: #{tpu_custom_call.1} parent=35 // pred_check
          %p890 = pneg %p143
        $region50: #{tpu_custom_call.1} parent=35 // pred_check_branch
          %892 = sbr.rel (%p890) target = $region52
        $region51: #{tpu_custom_call.1} parent=35 // pred_region
          %s894 = ssub.s32 128, 128
          %895 = vsyncadd %s886, %s894
          %s896 = sadd.s32 %s27, %s26
          %s897 = smul.addr %s896, 128
          %s898 = scalar_lea.hbm %s4, %s897
          %s900 = sshll.u32 %s889, 4
          %s901 = int_to_ptr.vmem [resolvable:$true] %s900
          %903 = dma.vmem_to_hbm [thread:$0]  %s901, 128, %s898, %s886
        $region52: #{tpu_custom_call.1} parent=35 // pred_fallthru
          _
      $region36: #{tpu_custom_call.1} parent=5 // pred_fallthru
        _
      %p904 = scmp.le.s32.totalorder 2, %s17
      // Predicated region
      $region53: #{tpu_custom_call.1} parent=5 // pred_check
        %p905 = pneg %p904
      $region54: #{tpu_custom_call.1} parent=5 // pred_check_branch
        %907 = sbr.rel (%p905) target = $region56
      $region55: #{tpu_custom_call.1} parent=5 // pred_region
        %s908 = ssub.s32 %s17, 2
        // Predicated region
        $region57: #{tpu_custom_call.1} parent=55 // pred_check
          %p909 = pneg %p149
        $region58: #{tpu_custom_call.1} parent=55 // pred_check_branch
          %911 = sbr.rel (%p909) target = $region60
        $region59: #{tpu_custom_call.1} parent=55 // pred_region
          %s912 = sand.u32 %s134, 1
          %s913 = scalar_lea.sflag [#allocation5], %s912
          %s914 = sand.u32 %s134, 1
          %s915 = smul.addr %s914, 8
          %s916 = scalar_lea.vmem [#allocation9], %s915
          %917 = dma.done %s913, 128
        $region60: #{tpu_custom_call.1} parent=55 // pred_fallthru
          _
      $region56: #{tpu_custom_call.1} parent=5 // pred_fallthru
        _
    $region6: #{tpu_custom_call.1} parent=1 // loop_footer
      %s21 = sadd.s32 1, %s17
    $region7: #{tpu_custom_call.1} parent=1 // loop_footer_branch
      %16 = sbr.rel target = $region3
    $region8: #{tpu_custom_call.1} parent=1 // loop_exit
      _
    %918 = vsyncpa [#allocation4], 1
    %s919 = scalar_lea.sflag [#allocation4], 1
    %920 = vsyncpa %s919, 1
    %921 = vsyncpa [#allocation7], 1
    %922 = vsyncpa [#allocation5], 1
    %s923 = scalar_lea.sflag [#allocation5], 1
    %924 = vsyncpa %s923, 1

</llo_original>
